<compile_context>
chip_gen: v5e
topology: v5e:2x2
jax: 0.10.0
libtpu: 0.0.40
codegen_flags: <defaults>
</compile_context>

<pallas_src>
import math

import jax
import jax.numpy as jnp
from jax.experimental import pallas as pl
from jax.experimental.pallas import tpu as pltpu


# ----------------------------------------------------------------------------- kernel
def siamese_kernel(a1_ref, w1t_ref, b1_ref, w2t_ref, b2_ref,
                   wf1_ref, bf1_ref, wf2_ref, out_ref,
                   h1_scr, h2_scr):
    # a1_ref : (8, 2, tb, 64)  conv1 LHS, dims (out-row i, tower, pair, 5x12 window), bf16
    # w1t_ref: (64, 256)       conv1 Toeplitz weight, lanes = (j, c), bf16
    # w2t_ref: (5, 256, 256)   conv2 Toeplitz weights per di, (j,ci) x (oj,co), bf16
    # wf1_ref: (4, 256, 128)   fc1 weights per oi, (oj,co) x m, bf16
    # wf2_ref: (1, 128)        fc2 weight row, f32
    # biases : f32 (conv biases pre-tiled along lanes to 256)
    # h1_scr : (16*tb, 256)    bf16, rows = (i, s)
    # h2_scr : (8*tb, 256)     bf16, rows = (oi, s)
    tb = a1_ref.shape[2]          # pairs in this tile
    b = 2 * tb                    # samples in this tile (both towers)
    cdt = h1_scr.dtype            # MXU input dtype (bf16)

    # ---- conv1: one Toeplitz matmul, output already in (i, s) x (j, c) layout --------
    a1 = a1_ref[...].reshape(8 * b, a1_ref.shape[3])          # leading-dim collapse (view)
    h1 = jnp.dot(a1, w1t_ref[...], preferred_element_type=jnp.float32)
    h1 = jnp.maximum(h1 + b1_ref[...], 0.0)                   # bias/relu in f32 (v5e-safe)
    h1_scr[...] = h1.astype(cdt)                              # one dense 256-lane store

    # ---- conv2: 5 accumulating matmuls over di; LHS = contiguous h1 row-slabs --------
    acc = jnp.zeros((4 * b, 256), jnp.float32)
    for di in range(5):
        lhs = h1_scr[pl.ds(di * b, 4 * b), :]                 # rows (oi, s) for i = di+oi
        acc = acc + jnp.dot(lhs, w2t_ref[di], preferred_element_type=jnp.float32)
    h2 = jnp.maximum(acc + b2_ref[...], 0.0)                  # (4b, 256) = (oi,s)x(oj,co)
    h2_scr[...] = h2.astype(cdt)                              # one dense 256-lane store

    # ---- fc1: 4 accumulating matmuls over oi; LHS = contiguous h2 row-slabs ----------
    f1 = jnp.zeros((b, 128), jnp.float32)
    for oi in range(4):
        f1 = f1 + jnp.dot(h2_scr[pl.ds(oi * b, b), :], wf1_ref[oi],
                          preferred_element_type=jnp.float32)
    f1 = jnp.maximum(f1 + bf1_ref[...], 0.0)                  # (b, 128), f32

    # ---- fc2 (+ |o1 - o2| -> sigmoid): bias cancels; f32 tower difference first ------
    d = f1[:tb, :] - f1[tb:, :]                               # (tb, 128), f32
    o = jnp.sum(d * wf2_ref[...], axis=-1, keepdims=True)     # VPU mul + lane reduce
    out_ref[...] = jax.nn.sigmoid(jnp.abs(o))


# ----------------------------------------------------------------------------- wrapper helpers
def _conv1_lhs(x_nchw):
    """(N, 1, 12, 12) -> (8, N, 64): row i holds the 5-row window x[:, i:i+5, :]
    flattened as (di*12 + col), zero-padded from 60 to 64 taps."""
    x = x_nchw[:, 0].astype(jnp.float32)                      # (N, 12, 12)
    rows = [x[:, i:i + 5, :].reshape(x.shape[0], 60) for i in range(8)]
    a = jnp.stack(rows, axis=0)                               # (8, N, 60)
    return jnp.pad(a, ((0, 0), (0, 0), (0, 4)))               # (8, N, 64)


def _prep_weights(params, compute_dtype):
    # conv1 -> Toeplitz (64, 256): row = di*12 + col (padded to 64), lane = j*32 + c
    w1 = jnp.transpose(params["conv1_w"][:, 0], (1, 2, 0))    # (5, 5, 32) = (di, dj, c)
    w1t = jnp.zeros((5, 12, 8, 32), jnp.float32)              # (di, col, j, c)
    for j in range(8):
        w1t = w1t.at[:, j:j + 5, j, :].set(w1)
    w1t = jnp.pad(w1t.reshape(60, 256), ((0, 4), (0, 0))).astype(compute_dtype)

    # conv2 -> 5 Toeplitz blocks (5, 256, 256): row = j*32 + ci, lane = oj*64 + co
    w2 = jnp.transpose(params["conv2_w"], (2, 3, 1, 0))       # (5, 5, 32, 64) = (di,dj,ci,co)
    w2t = jnp.zeros((5, 8, 32, 4, 64), jnp.float32)           # (di, j, ci, oj, co)
    for oj in range(4):
        w2t = w2t.at[:, oj:oj + 5, :, oj, :].set(w2)
    w2t = w2t.reshape(5, 256, 256).astype(compute_dtype)

    # fc1 -> (4, 256, 128): per-oi block, row = oj*64 + co, lane = m
    wf1 = params["fc1_w"].reshape(128, 64, 4, 4)              # (m, co, oi, oj)
    wf1 = jnp.transpose(wf1, (2, 3, 1, 0)).reshape(4, 256, 128).astype(compute_dtype)

    b1t = jnp.tile(params["conv1_b"], 8).reshape(1, 256).astype(jnp.float32)
    b2t = jnp.tile(params["conv2_b"], 4).reshape(1, 256).astype(jnp.float32)
    bf1 = params["fc1_b"].reshape(1, 128).astype(jnp.float32)
    wf2 = params["fc2_w"].reshape(1, 128).astype(jnp.float32)
    return w1t, b1t, w2t, b2t, wf1, bf1, wf2


# ----------------------------------------------------------------------------- wrapper
def siamese_forward(x1_nchw, x2_nchw, params, *, compute_dtype=jnp.bfloat16, max_tile=256):
    n = x1_nchw.shape[0]

    # Batch (pair) tile: multiple of 8 (aligned row slabs), >=2 grid tiles whenever
    # n > 8 (so the "parallel" axis can shard across v7x's two TensorCores), low
    # padding waste, capped at 256 pairs (~15 MiB/tile, fits v7x's 64 MiB VMEM).
    tb = min(max_tile, max(8, 8 * ((n + 15) // 16)))
    n_pad = -(-n // tb) * tb
    n_tiles = n_pad // tb

    # Build the conv1 Toeplitz LHS for both towers: (8, 2, n_pad, 64), bf16.
    a1 = jnp.stack([_conv1_lhs(x1_nchw), _conv1_lhs(x2_nchw)], axis=1)
    if n_pad != n:
        a1 = jnp.pad(a1, ((0, 0), (0, 0), (0, n_pad - n), (0, 0)))
    a1 = a1.astype(compute_dtype)

    w1t, b1t, w2t, b2t, wf1, bf1, wf2 = _prep_weights(params, compute_dtype)

    out = pl.pallas_call(
        siamese_kernel,
        out_shape=jax.ShapeDtypeStruct((n_pad, 1), jnp.float32),
        grid=(n_tiles,),
        in_specs=[
            pl.BlockSpec((8, 2, tb, 64), lambda i: (0, 0, i, 0)),   # activations: tiled over pairs
            pl.BlockSpec((64, 256), lambda i: (0, 0)),              # weights: resident
            pl.BlockSpec((1, 256), lambda i: (0, 0)),
            pl.BlockSpec((5, 256, 256), lambda i: (0, 0, 0)),
            pl.BlockSpec((1, 256), lambda i: (0, 0)),
            pl.BlockSpec((4, 256, 128), lambda i: (0, 0, 0)),
            pl.BlockSpec((1, 128), lambda i: (0, 0)),
            pl.BlockSpec((1, 128), lambda i: (0, 0)),
        ],
        out_specs=pl.BlockSpec((tb, 1), lambda i: (i, 0)),
        scratch_shapes=[
            pltpu.VMEM((16 * tb, 256), compute_dtype),   # h1, rows = (i, s), bf16
            pltpu.VMEM((8 * tb, 256), compute_dtype),    # h2, rows = (oi, s), bf16
        ],
        compiler_params=pltpu.CompilerParams(
            dimension_semantics=("parallel",),           # shard pair-tiles across TCs (v7x)
            vmem_limit_bytes=48 * 1024 * 1024,           # headroom under v7x's 64 MiB
        ),
    )(a1, w1t, b1t, w2t, b2t, wf1, bf1, wf2)

    return out[:n]


# ----------------------------------------------------------------------------- params
def init_params(key):
    ks = jax.random.split(key, 8)

    def u(k, shape, fan_in):
        bound = 1.0 / math.sqrt(fan_in)
        return jax.random.uniform(k, shape, jnp.float32, -bound, bound)

    return {
        "conv1_w": u(ks[0], (32, 1, 5, 5), 1 * 5 * 5),
        "conv1_b": u(ks[1], (32,), 1 * 5 * 5),
        "conv2_w": u(ks[2], (64, 32, 5, 5), 32 * 5 * 5),
        "conv2_b": u(ks[3], (64,), 32 * 5 * 5),
        "fc1_w":   u(ks[4], (128, 1024), 1024),
        "fc1_b":   u(ks[5], (128,), 1024),
        "fc2_w":   u(ks[6], (1, 128), 128),
        "fc2_b":   u(ks[7], (1,), 128),
    }


# ----------------------------------------------------------------------------- reference (plain JAX, NCHW, mirrors PyTorch exactly)
def reference_forward(x1, x2, p):
    def fwd_one(x):
        y = jax.lax.conv_general_dilated(
            x, p["conv1_w"], (1, 1), "VALID",
            dimension_numbers=("NCHW", "OIHW", "NCHW")) + p["conv1_b"].reshape(1, -1, 1, 1)
        y = jax.nn.relu(y)
        y = jax.lax.conv_general_dilated(
            y, p["conv2_w"], (1, 1), "VALID",
            dimension_numbers=("NCHW", "OIHW", "NCHW")) + p["conv2_b"].reshape(1, -1, 1, 1)
        y = jax.nn.relu(y)
        y = y.reshape(y.shape[0], -1)
        y = jax.nn.relu(y @ p["fc1_w"].T + p["fc1_b"])
        return y @ p["fc2_w"].T + p["fc2_b"]

    return jax.nn.sigmoid(jnp.abs(fwd_one(x1) - fwd_one(x2)))


# ----------------------------------------------------------------------------- main
if __name__ == "__main__":
    key = jax.random.PRNGKey(0)
    kp, k1, k2 = jax.random.split(key, 3)
    params = init_params(kp)

    # batch=2, 1 channel, 12x12 spatial (required so flatten size == 64*4*4 = 1024)
    x1 = jax.random.normal(k1, (2, 1, 12, 12), jnp.float32)
    x2 = jax.random.normal(k2, (2, 1, 12, 12), jnp.float32)

    fwd = jax.jit(siamese_forward)
    out = jax.block_until_ready(fwd(x1, x2, params))

    ref = reference_forward(x1, x2, params)
    assert out.shape == (2, 1), out.shape
    max_err = float(jnp.max(jnp.abs(out - ref)))
    # bf16 MXU inputs with f32 accumulation; tower difference taken in f32 before fc2.
    assert max_err < 1e-2, f"mismatch vs reference: {max_err}"

    print("KERNEL_OK")
</pallas_src>

<mosaic_0001>
module attributes {stable_mosaic.version = 11 : i64} {
  func.func @siamese_kernel(%arg0: i32, %arg1: memref<8x2x8x64xbf16, #tpu.memory_space<vmem>>, %arg2: memref<64x256xbf16, #tpu.memory_space<vmem>>, %arg3: memref<1x256xf32, #tpu.memory_space<vmem>>, %arg4: memref<5x256x256xbf16, #tpu.memory_space<vmem>>, %arg5: memref<1x256xf32, #tpu.memory_space<vmem>>, %arg6: memref<4x256x128xbf16, #tpu.memory_space<vmem>>, %arg7: memref<1x128xf32, #tpu.memory_space<vmem>>, %arg8: memref<1x128xf32, #tpu.memory_space<vmem>>, %arg9: memref<8x1xf32, #tpu.memory_space<vmem>>, %arg10: memref<128x256xbf16, #tpu.memory_space<vmem>>, %arg11: memref<64x256xbf16, #tpu.memory_space<vmem>>) attributes {dimension_semantics = [#tpu.dimension_semantics<parallel>], iteration_bounds = array<i64: 1>, scalar_prefetch = 0 : i64, scratch_operands = 2 : i64, tpu.core_type = #tpu.core_type<tc>, window_params = [{transform_indices = @transform_0, window_bounds = array<i64: 8, 2, 8, 64>}, {pipeline_mode = #tpu.pipeline_mode<synchronous>, transform_indices = @transform_1, window_bounds = array<i64: 64, 256>}, {pipeline_mode = #tpu.pipeline_mode<synchronous>, transform_indices = @transform_2, window_bounds = array<i64: 1, 256>}, {pipeline_mode = #tpu.pipeline_mode<synchronous>, transform_indices = @transform_3, window_bounds = array<i64: 5, 256, 256>}, {pipeline_mode = #tpu.pipeline_mode<synchronous>, transform_indices = @transform_4, window_bounds = array<i64: 1, 256>}, {pipeline_mode = #tpu.pipeline_mode<synchronous>, transform_indices = @transform_5, window_bounds = array<i64: 4, 256, 128>}, {pipeline_mode = #tpu.pipeline_mode<synchronous>, transform_indices = @transform_6, window_bounds = array<i64: 1, 128>}, {pipeline_mode = #tpu.pipeline_mode<synchronous>, transform_indices = @transform_7, window_bounds = array<i64: 1, 128>}, {transform_indices = @transform_8, window_bounds = array<i64: 8, 1>}]} {
    %c0 = arith.constant 0 : index
    %c0_0 = arith.constant 0 : index
    %c0_1 = arith.constant 0 : index
    %c0_2 = arith.constant 0 : index
    %0 = vector.load %arg1[%c0, %c0_0, %c0_1, %c0_2] : memref<8x2x8x64xbf16, #tpu.memory_space<vmem>>, vector<8x2x8x64xbf16>
    %1 = vector.shape_cast %0 : vector<8x2x8x64xbf16> to vector<128x64xbf16>
    %c0_3 = arith.constant 0 : index
    %c0_4 = arith.constant 0 : index
    %2 = vector.load %arg2[%c0_3, %c0_4] : memref<64x256xbf16, #tpu.memory_space<vmem>>, vector<64x256xbf16>
    %cst = arith.constant dense<0.000000e+00> : vector<128x256xf32>
    %3 = tpu.matmul %1, %2, %cst {dimension_numbers = #tpu.dot_dimension_numbers<[1], [0], [0], [1], [0, 0, 1, 1], [], []>} : vector<128x64xbf16>, vector<64x256xbf16>, vector<128x256xf32> -> vector<128x256xf32>
    %c0_5 = arith.constant 0 : index
    %c0_6 = arith.constant 0 : index
    %4 = vector.load %arg3[%c0_5, %c0_6] : memref<1x256xf32, #tpu.memory_space<vmem>>, vector<1x256xf32>
    %5 = vector.broadcast %4 : vector<1x256xf32> to vector<128x256xf32>
    %6 = arith.addf %3, %5 : vector<128x256xf32>
    %cst_7 = arith.constant 0.000000e+00 : f32
    %7 = vector.broadcast %cst_7 : f32 to vector<128x256xf32>
    %8 = arith.maximumf %6, %7 : vector<128x256xf32>
    %9 = arith.truncf %8 : vector<128x256xf32> to vector<128x256xbf16>
    %c0_8 = arith.constant 0 : index
    %c0_9 = arith.constant 0 : index
    %10 = vector.load %arg10[%c0_8, %c0_9] : memref<128x256xbf16, #tpu.memory_space<vmem>>, vector<128x256xbf16>
    tpu.vector_store %arg10[%c0_8, %c0_9], %9 {strides = array<i32>} : memref<128x256xbf16, #tpu.memory_space<vmem>>, vector<128x256xbf16>,
    %cst_10 = arith.constant 0.000000e+00 : f32
    %11 = vector.broadcast %cst_10 : f32 to vector<64x256xf32>
    %c0_11 = arith.constant 0 : index
    %c0_12 = arith.constant 0 : index
    %12 = vector.load %arg10[%c0_11, %c0_12] : memref<128x256xbf16, #tpu.memory_space<vmem>>, vector<64x256xbf16>
    %c0_13 = arith.constant 0 : index
    %c0_14 = arith.constant 0 : index
    %c0_15 = arith.constant 0 : index
    %13 = vector.load %arg4[%c0_13, %c0_14, %c0_15] : memref<5x256x256xbf16, #tpu.memory_space<vmem>>, vector<1x256x256xbf16>
    %14 = vector.shape_cast %13 : vector<1x256x256xbf16> to vector<256x256xbf16>
    %cst_16 = arith.constant dense<0.000000e+00> : vector<64x256xf32>
    %15 = tpu.matmul %12, %14, %cst_16 {dimension_numbers = #tpu.dot_dimension_numbers<[1], [0], [0], [1], [0, 0, 1, 1], [], []>} : vector<64x256xbf16>, vector<256x256xbf16>, vector<64x256xf32> -> vector<64x256xf32>
    %16 = arith.addf %11, %15 : vector<64x256xf32>
    %c16 = arith.constant 16 : index
    %c0_17 = arith.constant 0 : index
    %17 = vector.load %arg10[%c16, %c0_17] : memref<128x256xbf16, #tpu.memory_space<vmem>>, vector<64x256xbf16>
    %c1 = arith.constant 1 : index
    %c0_18 = arith.constant 0 : index
    %c0_19 = arith.constant 0 : index
    %18 = vector.load %arg4[%c1, %c0_18, %c0_19] : memref<5x256x256xbf16, #tpu.memory_space<vmem>>, vector<1x256x256xbf16>
    %19 = vector.shape_cast %18 : vector<1x256x256xbf16> to vector<256x256xbf16>
    %cst_20 = arith.constant dense<0.000000e+00> : vector<64x256xf32>
    %20 = tpu.matmul %17, %19, %cst_20 {dimension_numbers = #tpu.dot_dimension_numbers<[1], [0], [0], [1], [0, 0, 1, 1], [], []>} : vector<64x256xbf16>, vector<256x256xbf16>, vector<64x256xf32> -> vector<64x256xf32>
    %21 = arith.addf %16, %20 : vector<64x256xf32>
    %c32 = arith.constant 32 : index
    %c0_21 = arith.constant 0 : index
    %22 = vector.load %arg10[%c32, %c0_21] : memref<128x256xbf16, #tpu.memory_space<vmem>>, vector<64x256xbf16>
    %c2 = arith.constant 2 : index
    %c0_22 = arith.constant 0 : index
    %c0_23 = arith.constant 0 : index
    %23 = vector.load %arg4[%c2, %c0_22, %c0_23] : memref<5x256x256xbf16, #tpu.memory_space<vmem>>, vector<1x256x256xbf16>
    %24 = vector.shape_cast %23 : vector<1x256x256xbf16> to vector<256x256xbf16>
    %cst_24 = arith.constant dense<0.000000e+00> : vector<64x256xf32>
    %25 = tpu.matmul %22, %24, %cst_24 {dimension_numbers = #tpu.dot_dimension_numbers<[1], [0], [0], [1], [0, 0, 1, 1], [], []>} : vector<64x256xbf16>, vector<256x256xbf16>, vector<64x256xf32> -> vector<64x256xf32>
    %26 = arith.addf %21, %25 : vector<64x256xf32>
    %c48 = arith.constant 48 : index
    %c0_25 = arith.constant 0 : index
    %27 = vector.load %arg10[%c48, %c0_25] : memref<128x256xbf16, #tpu.memory_space<vmem>>, vector<64x256xbf16>
    %c3 = arith.constant 3 : index
    %c0_26 = arith.constant 0 : index
    %c0_27 = arith.constant 0 : index
    %28 = vector.load %arg4[%c3, %c0_26, %c0_27] : memref<5x256x256xbf16, #tpu.memory_space<vmem>>, vector<1x256x256xbf16>
    %29 = vector.shape_cast %28 : vector<1x256x256xbf16> to vector<256x256xbf16>
    %cst_28 = arith.constant dense<0.000000e+00> : vector<64x256xf32>
    %30 = tpu.matmul %27, %29, %cst_28 {dimension_numbers = #tpu.dot_dimension_numbers<[1], [0], [0], [1], [0, 0, 1, 1], [], []>} : vector<64x256xbf16>, vector<256x256xbf16>, vector<64x256xf32> -> vector<64x256xf32>
    %31 = arith.addf %26, %30 : vector<64x256xf32>
    %c64 = arith.constant 64 : index
    %c0_29 = arith.constant 0 : index
    %32 = vector.load %arg10[%c64, %c0_29] : memref<128x256xbf16, #tpu.memory_space<vmem>>, vector<64x256xbf16>
    %c4 = arith.constant 4 : index
    %c0_30 = arith.constant 0 : index
    %c0_31 = arith.constant 0 : index
    %33 = vector.load %arg4[%c4, %c0_30, %c0_31] : memref<5x256x256xbf16, #tpu.memory_space<vmem>>, vector<1x256x256xbf16>
    %34 = vector.shape_cast %33 : vector<1x256x256xbf16> to vector<256x256xbf16>
    %cst_32 = arith.constant dense<0.000000e+00> : vector<64x256xf32>
    %35 = tpu.matmul %32, %34, %cst_32 {dimension_numbers = #tpu.dot_dimension_numbers<[1], [0], [0], [1], [0, 0, 1, 1], [], []>} : vector<64x256xbf16>, vector<256x256xbf16>, vector<64x256xf32> -> vector<64x256xf32>
    %36 = arith.addf %31, %35 : vector<64x256xf32>
    %c0_33 = arith.constant 0 : index
    %c0_34 = arith.constant 0 : index
    %37 = vector.load %arg5[%c0_33, %c0_34] : memref<1x256xf32, #tpu.memory_space<vmem>>, vector<1x256xf32>
    %38 = vector.broadcast %37 : vector<1x256xf32> to vector<64x256xf32>
    %39 = arith.addf %36, %38 : vector<64x256xf32>
    %cst_35 = arith.constant 0.000000e+00 : f32
    %40 = vector.broadcast %cst_35 : f32 to vector<64x256xf32>
    %41 = arith.maximumf %39, %40 : vector<64x256xf32>
    %42 = arith.truncf %41 : vector<64x256xf32> to vector<64x256xbf16>
    %c0_36 = arith.constant 0 : index
    %c0_37 = arith.constant 0 : index
    %43 = vector.load %arg11[%c0_36, %c0_37] : memref<64x256xbf16, #tpu.memory_space<vmem>>, vector<64x256xbf16>
    tpu.vector_store %arg11[%c0_36, %c0_37], %42 {strides = array<i32>} : memref<64x256xbf16, #tpu.memory_space<vmem>>, vector<64x256xbf16>,
    %cst_38 = arith.constant 0.000000e+00 : f32
    %44 = vector.broadcast %cst_38 : f32 to vector<16x128xf32>
    %c0_39 = arith.constant 0 : index
    %c0_40 = arith.constant 0 : index
    %45 = vector.load %arg11[%c0_39, %c0_40] : memref<64x256xbf16, #tpu.memory_space<vmem>>, vector<16x256xbf16>
    %c0_41 = arith.constant 0 : index
    %c0_42 = arith.constant 0 : index
    %c0_43 = arith.constant 0 : index
    %46 = vector.load %arg6[%c0_41, %c0_42, %c0_43] : memref<4x256x128xbf16, #tpu.memory_space<vmem>>, vector<1x256x128xbf16>
    %47 = vector.shape_cast %46 : vector<1x256x128xbf16> to vector<256x128xbf16>
    %cst_44 = arith.constant dense<0.000000e+00> : vector<16x128xf32>
    %48 = tpu.matmul %45, %47, %cst_44 {dimension_numbers = #tpu.dot_dimension_numbers<[1], [0], [0], [1], [0, 0, 1, 1], [], []>} : vector<16x256xbf16>, vector<256x128xbf16>, vector<16x128xf32> -> vector<16x128xf32>
    %49 = arith.addf %44, %48 : vector<16x128xf32>
    %c16_45 = arith.constant 16 : index
    %c0_46 = arith.constant 0 : index
    %50 = vector.load %arg11[%c16_45, %c0_46] : memref<64x256xbf16, #tpu.memory_space<vmem>>, vector<16x256xbf16>
    %c1_47 = arith.constant 1 : index
    %c0_48 = arith.constant 0 : index
    %c0_49 = arith.constant 0 : index
    %51 = vector.load %arg6[%c1_47, %c0_48, %c0_49] : memref<4x256x128xbf16, #tpu.memory_space<vmem>>, vector<1x256x128xbf16>
    %52 = vector.shape_cast %51 : vector<1x256x128xbf16> to vector<256x128xbf16>
    %cst_50 = arith.constant dense<0.000000e+00> : vector<16x128xf32>
    %53 = tpu.matmul %50, %52, %cst_50 {dimension_numbers = #tpu.dot_dimension_numbers<[1], [0], [0], [1], [0, 0, 1, 1], [], []>} : vector<16x256xbf16>, vector<256x128xbf16>, vector<16x128xf32> -> vector<16x128xf32>
    %54 = arith.addf %49, %53 : vector<16x128xf32>
    %c32_51 = arith.constant 32 : index
    %c0_52 = arith.constant 0 : index
    %55 = vector.load %arg11[%c32_51, %c0_52] : memref<64x256xbf16, #tpu.memory_space<vmem>>, vector<16x256xbf16>
    %c2_53 = arith.constant 2 : index
    %c0_54 = arith.constant 0 : index
    %c0_55 = arith.constant 0 : index
    %56 = vector.load %arg6[%c2_53, %c0_54, %c0_55] : memref<4x256x128xbf16, #tpu.memory_space<vmem>>, vector<1x256x128xbf16>
    %57 = vector.shape_cast %56 : vector<1x256x128xbf16> to vector<256x128xbf16>
    %cst_56 = arith.constant dense<0.000000e+00> : vector<16x128xf32>
    %58 = tpu.matmul %55, %57, %cst_56 {dimension_numbers = #tpu.dot_dimension_numbers<[1], [0], [0], [1], [0, 0, 1, 1], [], []>} : vector<16x256xbf16>, vector<256x128xbf16>, vector<16x128xf32> -> vector<16x128xf32>
    %59 = arith.addf %54, %58 : vector<16x128xf32>
    %c48_57 = arith.constant 48 : index
    %c0_58 = arith.constant 0 : index
    %60 = vector.load %arg11[%c48_57, %c0_58] : memref<64x256xbf16, #tpu.memory_space<vmem>>, vector<16x256xbf16>
    %c3_59 = arith.constant 3 : index
    %c0_60 = arith.constant 0 : index
    %c0_61 = arith.constant 0 : index
    %61 = vector.load %arg6[%c3_59, %c0_60, %c0_61] : memref<4x256x128xbf16, #tpu.memory_space<vmem>>, vector<1x256x128xbf16>
    %62 = vector.shape_cast %61 : vector<1x256x128xbf16> to vector<256x128xbf16>
    %cst_62 = arith.constant dense<0.000000e+00> : vector<16x128xf32>
    %63 = tpu.matmul %60, %62, %cst_62 {dimension_numbers = #tpu.dot_dimension_numbers<[1], [0], [0], [1], [0, 0, 1, 1], [], []>} : vector<16x256xbf16>, vector<256x128xbf16>, vector<16x128xf32> -> vector<16x128xf32>
    %64 = arith.addf %59, %63 : vector<16x128xf32>
    %c0_63 = arith.constant 0 : index
    %c0_64 = arith.constant 0 : index
    %65 = vector.load %arg7[%c0_63, %c0_64] : memref<1x128xf32, #tpu.memory_space<vmem>>, vector<1x128xf32>
    %66 = vector.broadcast %65 : vector<1x128xf32> to vector<16x128xf32>
    %67 = arith.addf %64, %66 : vector<16x128xf32>
    %cst_65 = arith.constant 0.000000e+00 : f32
    %68 = vector.broadcast %cst_65 : f32 to vector<16x128xf32>
    %69 = arith.maximumf %67, %68 : vector<16x128xf32>
    %70 = vector.extract_strided_slice %69 {offsets = [0, 0], sizes = [8, 128], strides = [1, 1]} : vector<16x128xf32> to vector<8x128xf32>
    %71 = vector.extract_strided_slice %69 {offsets = [8, 0], sizes = [8, 128], strides = [1, 1]} : vector<16x128xf32> to vector<8x128xf32>
    %72 = arith.subf %70, %71 : vector<8x128xf32>
    %c0_66 = arith.constant 0 : index
    %c0_67 = arith.constant 0 : index
    %73 = vector.load %arg8[%c0_66, %c0_67] : memref<1x128xf32, #tpu.memory_space<vmem>>, vector<1x128xf32>
    %74 = vector.broadcast %73 : vector<1x128xf32> to vector<8x128xf32>
    %75 = arith.mulf %72, %74 : vector<8x128xf32>
    %cst_68 = arith.constant dense<0.000000e+00> : vector<8xf32>
    %76 = vector.multi_reduction <add>, %75, %cst_68 [1] : vector<8x128xf32> to vector<8xf32>
    %77 = vector.shape_cast %76 : vector<8xf32> to vector<8x1xf32>
    %78 = math.absf %77 : vector<8x1xf32>
    %79 = arith.negf %78 : vector<8x1xf32>
    %80 = math.exp %79 : vector<8x1xf32>
    %cst_69 = arith.constant 1.000000e+00 : f32
    %81 = vector.broadcast %cst_69 : f32 to vector<8x1xf32>
    %82 = arith.addf %81, %80 : vector<8x1xf32>
    %83 = arith.divf %81, %82 : vector<8x1xf32>
    %c0_70 = arith.constant 0 : index
    %c0_71 = arith.constant 0 : index
    %84 = vector.load %arg9[%c0_70, %c0_71] : memref<8x1xf32, #tpu.memory_space<vmem>>, vector<8x1xf32>
    tpu.vector_store %arg9[%c0_70, %c0_71], %83 {strides = array<i32>} : memref<8x1xf32, #tpu.memory_space<vmem>>, vector<8x1xf32>,
    return
  }
  func.func @transform_0(%arg0: i32) -> (i32, i32, i32, i32) {
    %c0_i32 = arith.constant 0 : i32
    %c0_i32_0 = arith.constant 0 : i32
    %c0_i32_1 = arith.constant 0 : i32
    %c0_i32_2 = arith.constant 0 : i32
    return %c0_i32, %c0_i32_0, %arg0, %c0_i32_1 : i32, i32, i32, i32
  }
  func.func @transform_1(%arg0: i32) -> (i32, i32) {
    %c0_i32 = arith.constant 0 : i32
    %c0_i32_0 = arith.constant 0 : i32
    %c0_i32_1 = arith.constant 0 : i32
    return %c0_i32, %c0_i32_0 : i32, i32
  }
  func.func @transform_2(%arg0: i32) -> (i32, i32) {
    %c0_i32 = arith.constant 0 : i32
    %c0_i32_0 = arith.constant 0 : i32
    %c0_i32_1 = arith.constant 0 : i32
    return %c0_i32, %c0_i32_0 : i32, i32
  }
  func.func @transform_3(%arg0: i32) -> (i32, i32, i32) {
    %c0_i32 = arith.constant 0 : i32
    %c0_i32_0 = arith.constant 0 : i32
    %c0_i32_1 = arith.constant 0 : i32
    %c0_i32_2 = arith.constant 0 : i32
    return %c0_i32, %c0_i32_0, %c0_i32_1 : i32, i32, i32
  }
  func.func @transform_4(%arg0: i32) -> (i32, i32) {
    %c0_i32 = arith.constant 0 : i32
    %c0_i32_0 = arith.constant 0 : i32
    %c0_i32_1 = arith.constant 0 : i32
    return %c0_i32, %c0_i32_0 : i32, i32
  }
  func.func @transform_5(%arg0: i32) -> (i32, i32, i32) {
    %c0_i32 = arith.constant 0 : i32
    %c0_i32_0 = arith.constant 0 : i32
    %c0_i32_1 = arith.constant 0 : i32
    %c0_i32_2 = arith.constant 0 : i32
    return %c0_i32, %c0_i32_0, %c0_i32_1 : i32, i32, i32
  }
  func.func @transform_6(%arg0: i32) -> (i32, i32) {
    %c0_i32 = arith.constant 0 : i32
    %c0_i32_0 = arith.constant 0 : i32
    %c0_i32_1 = arith.constant 0 : i32
    return %c0_i32, %c0_i32_0 : i32, i32
  }
  func.func @transform_7(%arg0: i32) -> (i32, i32) {
    %c0_i32 = arith.constant 0 : i32
    %c0_i32_0 = arith.constant 0 : i32
    %c0_i32_1 = arith.constant 0 : i32
    return %c0_i32, %c0_i32_0 : i32, i32
  }
  func.func @transform_8(%arg0: i32) -> (i32, i32) {
    %c0_i32 = arith.constant 0 : i32
    %c0_i32_0 = arith.constant 0 : i32
    return %arg0, %c0_i32 : i32, i32
  }
}

</mosaic_0001>

<llo_original>
// kernel: tile.13
$region0: #{tile.13}
  #allocation0 [shape = 's32[1]{0}', space=sflag, size = 0x4, scoped, tag = 'scoped memory for tile.13']
  %s0 = inlined_call_operand.vmem [shape: f32[32], index: 0, kind: input, shape index: {}]
  %s1 = inlined_call_operand.vmem [shape: f32[8,32], index: 1, kind: output, shape index: {}]
  // Predicated region
  $region2: #{tile.13} parent=0 // pred_check
    _
  $region3: #{tile.13} parent=0 // pred_check_branch
    %3 = sbr.rel (0) target = $region5
  $region4: #{tile.13} parent=0 // pred_region
    _
  $region5: #{tile.13} parent=0 // pred_fallthru
    _
  %v4 = vld [vmem:[%s0] ss:$0 sm:$0xff]
  %5 = vst [vmem:[%s1] sm:$0xff] %v4

// kernel: tile.14
$region0: #{tile.14}
  %s0 = inlined_call_operand.vmem [shape: f32[8,32], index: 0, kind: input, shape index: {}]
  %s1 = inlined_call_operand.vmem [shape: f32[1,256], index: 1, kind: output, shape index: {}]
  $region1: #{tile.14} parent=0
    #allocation0 [shape = 'u8[8192]{0}', space=vmem, size = 0x2000, scoped, tag = 'scoped mem for output reshape']
    %s2 = smov 3
    %v3 = vld [vmem:[%s0] ss:$4 sm:%s2]
    %vm4 = vcmask 261120
    %5 = vst.msk [vmem:[#allocation0] ss:$8 sm:$0x3] %vm4, %v3
    %s6 = scalar_lea.vmem %s0, 3
    %s7 = smov 3
    %v8 = vld [vmem:[%s6] ss:$4 sm:%s7]
    %9 = vrot.lane.b32.xlu0 %v8, 96
    %v10 = vpop.permute.xlu0 %9
    %vm11 = vcmask 1048320
    %12 = vst.msk [vmem:[#allocation0] ss:$8 sm:$0x3] %vm11, %v10
    %s13 = scalar_lea.vmem %s0, 2
    %s14 = smov 3
    %v15 = vld [vmem:[%s13] ss:$4 sm:%s14]
    %16 = vrot.lane.b32.xlu0 %v15, 64
    %v17 = vpop.permute.xlu0 %16
    %vm18 = vcmask 785920
    %19 = vst.msk [vmem:[#allocation0] ss:$8 sm:$0x3] %vm18, %v17
    %s20 = scalar_lea.vmem %s0, 1
    %s21 = smov 3
    %v22 = vld [vmem:[%s20] ss:$4 sm:%s21]
    %23 = vrot.lane.b32.xlu0 %v22, 32
    %v24 = vpop.permute.xlu0 %23
    %vm25 = vcmask 523520
    %26 = vst.msk [vmem:[#allocation0] ss:$8 sm:$0x3] %vm25, %v24
    %s28 = ssub.s32 2, 1
    %v29 = vld [vmem:[#allocation0] sm:%s28]
    %s31 = ssub.s32 2, 1
    %32 = vst [vmem:[%s1] sm:%s31] %v29
    %s33 = scalar_lea.vmem [#allocation0], 8
    %v34 = vld [vmem:[%s33] sm:%s28]
    %s36 = ssub.s32 2, 1
    %s37 = scalar_lea.vmem %s1, 1
    %38 = vst [vmem:[%s37] sm:%s36] %v34

// kernel: tile.18
$region0: #{tile.18}
  #allocation0 [shape = 's32[1]{0}', space=sflag, size = 0x4, scoped, tag = 'scoped memory for tile.18']
  %s0 = inlined_call_operand.vmem [shape: f32[64], index: 0, kind: input, shape index: {}]
  %s1 = inlined_call_operand.vmem [shape: f32[4,64], index: 1, kind: output, shape index: {}]
  // Predicated region
  $region2: #{tile.18} parent=0 // pred_check
    _
  $region3: #{tile.18} parent=0 // pred_check_branch
    %3 = sbr.rel (0) target = $region5
  $region4: #{tile.18} parent=0 // pred_region
    _
  $region5: #{tile.18} parent=0 // pred_fallthru
    _
  %v4 = vld [vmem:[%s0] ss:$0 sm:$0xff]
  %5 = vst [vmem:[%s1] sm:$0xf] %v4

// kernel: tile.19
$region0: #{tile.19}
  %s0 = inlined_call_operand.vmem [shape: f32[4,64], index: 0, kind: input, shape index: {}]
  %s1 = inlined_call_operand.vmem [shape: f32[1,256], index: 1, kind: output, shape index: {}]
  $region1: #{tile.19} parent=0
    #allocation0 [shape = 'u8[8192]{0}', space=vmem, size = 0x2000, scoped, tag = 'scoped mem for output reshape']
    #allocation1 [shape = 'u8[4096]{0}', space=vmem, size = 0x1000, scoped, tag = 'scoped mem for input reshape']
    %s3 = ssub.s32 16, 1
    %v4 = vld [vmem:[%s0] sm:%s3]
    %5 = vst [vmem:[#allocation1] sm:%s3] %v4
    %s6 = smov 3
    %v7 = vld [vmem:[#allocation1] ss:$2 sm:%s6]
    %vm8 = vcmask 523264
    %9 = vst.msk [vmem:[#allocation0] ss:$8 sm:$0x3] %vm8, %v7
    %s10 = scalar_lea.vmem [#allocation1], 1
    %s11 = smov 3
    %v12 = vld [vmem:[%s10] ss:$2 sm:%s11]
    %13 = vrot.lane.b32.xlu0 %v12, 64
    %v14 = vpop.permute.xlu0 %13
    %vm15 = vcmask 1048064
    %16 = vst.msk [vmem:[#allocation0] ss:$8 sm:$0x3] %vm15, %v14
    %s18 = ssub.s32 2, 1
    %v19 = vld [vmem:[#allocation0] sm:%s18]
    %s21 = ssub.s32 2, 1
    %22 = vst [vmem:[%s1] sm:%s21] %v19
    %s23 = scalar_lea.vmem [#allocation0], 8
    %v24 = vld [vmem:[%s23] sm:%s18]
    %s26 = ssub.s32 2, 1
    %s27 = scalar_lea.vmem %s1, 1
    %28 = vst [vmem:[%s27] sm:%s26] %v24

// kernel: siamese_forward.1
$region0: #{siamese_forward.1}
  #allocation0 [shape = 'u32[]', space=smem, size = 0x4, offset = 0x4, fixed_abs, tag = 'smem constant byte address 0x4 - core index']
  #allocation1 [shape = 'u32[72,128]{1,0:T(1,128)}', space=vmem, size = 0x9000, scoped, tag = 'internal scratch']
  #allocation2 [shape = 'bf16[128,256]{1,0:T(8,128)(2,1)}', space=vmem, size = 0x10000, scoped, tag = 'scratch operand']
  #allocation3 [shape = 'bf16[64,256]{1,0:T(8,128)(2,1)}', space=vmem, size = 0x8000, scoped, tag = 'scratch operand']
  %s0 = inlined_call_operand.vmem [shape: bf16[8,2,8,64], index: 0, kind: input, shape index: {}]
  %s1 = inlined_call_operand.vmem [shape: bf16[64,256], index: 1, kind: input, shape index: {}]
  %s2 = inlined_call_operand.vmem [shape: f32[1,256], index: 2, kind: input, shape index: {}]
  %s3 = inlined_call_operand.vmem [shape: bf16[5,256,256], index: 3, kind: input, shape index: {}]
  %s4 = inlined_call_operand.vmem [shape: f32[1,256], index: 4, kind: input, shape index: {}]
  %s5 = inlined_call_operand.vmem [shape: bf16[4,256,128], index: 5, kind: input, shape index: {}]
  %s6 = inlined_call_operand.vmem [shape: f32[1,128], index: 6, kind: input, shape index: {}]
  %s7 = inlined_call_operand.vmem [shape: f32[1,128], index: 7, kind: input, shape index: {}]
  %s8 = inlined_call_operand.vmem [shape: f32[8,1], index: 8, kind: output, shape index: {}]
  %s9 = sld [smem:[#allocation0]]
  $region42: #{siamese_forward.1} parent=0
    _
  %s11 = ssub.s32 1, %s9
  %s12 = scalar_select 0, %s11, %s9
  // Predicated region
  $region2: #{siamese_forward.1} parent=0 // pred_check
    _
  $region3: #{siamese_forward.1} parent=0 // pred_check_branch
    %14 = sbr.rel (0) target = $region5
  $region4: #{siamese_forward.1} parent=0 // pred_region
    _
  $region5: #{siamese_forward.1} parent=0 // pred_fallthru
    _
  // Predicated region
  $region6: #{siamese_forward.1} parent=0 // pred_check
    _
  $region7: #{siamese_forward.1} parent=0 // pred_check_branch
    %16 = sbr.rel (0) target = $region9
  $region8: #{siamese_forward.1} parent=0 // pred_region
    _
  $region9: #{siamese_forward.1} parent=0 // pred_fallthru
    _
  // Predicated region
  $region10: #{siamese_forward.1} parent=0 // pred_check
    _
  $region11: #{siamese_forward.1} parent=0 // pred_check_branch
    %18 = sbr.rel (0) target = $region13
  $region12: #{siamese_forward.1} parent=0 // pred_region
    _
  $region13: #{siamese_forward.1} parent=0 // pred_fallthru
    _
  // Predicated region
  $region14: #{siamese_forward.1} parent=0 // pred_check
    _
  $region15: #{siamese_forward.1} parent=0 // pred_check_branch
    %20 = sbr.rel (0) target = $region17
  $region16: #{siamese_forward.1} parent=0 // pred_region
    _
  $region17: #{siamese_forward.1} parent=0 // pred_fallthru
    _
  // Predicated region
  $region18: #{siamese_forward.1} parent=0 // pred_check
    _
  $region19: #{siamese_forward.1} parent=0 // pred_check_branch
    %22 = sbr.rel (0) target = $region21
  $region20: #{siamese_forward.1} parent=0 // pred_region
    _
  $region21: #{siamese_forward.1} parent=0 // pred_fallthru
    _
  // Predicated region
  $region22: #{siamese_forward.1} parent=0 // pred_check
    _
  $region23: #{siamese_forward.1} parent=0 // pred_check_branch
    %24 = sbr.rel (0) target = $region25
  $region24: #{siamese_forward.1} parent=0 // pred_region
    _
  $region25: #{siamese_forward.1} parent=0 // pred_fallthru
    _
  // Predicated region
  $region26: #{siamese_forward.1} parent=0 // pred_check
    _
  $region27: #{siamese_forward.1} parent=0 // pred_check_branch
    %26 = sbr.rel (0) target = $region29
  $region28: #{siamese_forward.1} parent=0 // pred_region
    _
  $region29: #{siamese_forward.1} parent=0 // pred_fallthru
    _
  // Predicated region
  $region30: #{siamese_forward.1} parent=0 // pred_check
    _
  $region31: #{siamese_forward.1} parent=0 // pred_check_branch
    %28 = sbr.rel (0) target = $region33
  $region32: #{siamese_forward.1} parent=0 // pred_region
    _
  $region33: #{siamese_forward.1} parent=0 // pred_fallthru
    _
  %v30 = vld [vmem:[%s0] sm:$0xf]
  %v31 = vld [vmem:[%s0 + $0x4] sm:$0xf]
  %v32 = vld [vmem:[%s0 + $0x8] sm:$0xf]
  %v33 = vld [vmem:[%s0 + $0xc] sm:$0xf]
  %v34 = vld [vmem:[%s0 + $0x10] sm:$0xf]
  %v35 = vld [vmem:[%s0 + $0x14] sm:$0xf]
  %v36 = vld [vmem:[%s0 + $0x18] sm:$0xf]
  %v37 = vld [vmem:[%s0 + $0x1c] sm:$0xf]
  %v38 = vld [vmem:[%s0 + $0x20] sm:$0xf]
  %v39 = vld [vmem:[%s0 + $0x24] sm:$0xf]
  %v40 = vld [vmem:[%s0 + $0x28] sm:$0xf]
  %v41 = vld [vmem:[%s0 + $0x2c] sm:$0xf]
  %v42 = vld [vmem:[%s0 + $0x30] sm:$0xf]
  %v43 = vld [vmem:[%s0 + $0x34] sm:$0xf]
  %v44 = vld [vmem:[%s0 + $0x38] sm:$0xf]
  %v45 = vld [vmem:[%s0 + $0x3c] sm:$0xf]
  %v46 = vld [vmem:[%s1] sm:$0xff]
  %v47 = vld [vmem:[%s1 + $0x8] sm:$0xff]
  %v48 = vld [vmem:[%s1 + $0x10] sm:$0xff]
  %v49 = vld [vmem:[%s1 + $0x18] sm:$0xff]
  %v50 = vld [vmem:[%s1 + $0x20] sm:$0xff]
  %v51 = vld [vmem:[%s1 + $0x28] sm:$0xff]
  %v52 = vld [vmem:[%s1 + $0x30] sm:$0xff]
  %v53 = vld [vmem:[%s1 + $0x38] sm:$0xff]
  %v54 = vld [vmem:[%s2] sm:$0x3]
  %v56 = vperm.slane %v54, 0
  %v57 = vperm.slane %v54, 1
  %v76 = vunpack.c.l.b16 %v30
  %v77 = vunpack.c.l.b16 %v31
  %v78 = vunpack.c.l.b16 %v32
  %v79 = vunpack.c.l.b16 %v33
  %v80 = vunpack.c.l.b16 %v34
  %v81 = vunpack.c.l.b16 %v35
  %v82 = vunpack.c.l.b16 %v36
  %v83 = vunpack.c.l.b16 %v37
  %v84 = vunpack.c.l.b16 %v38
  %v85 = vunpack.c.l.b16 %v39
  %v86 = vunpack.c.l.b16 %v40
  %v87 = vunpack.c.l.b16 %v41
  %v88 = vunpack.c.l.b16 %v42
  %v89 = vunpack.c.l.b16 %v43
  %v90 = vunpack.c.l.b16 %v44
  %v91 = vunpack.c.l.b16 %v45
  %v92 = vpack.c.b16 %v77, %v76
  %v93 = vpack.c.b16 %v79, %v78
  %v94 = vpack.c.b16 %v81, %v80
  %v95 = vpack.c.b16 %v83, %v82
  %v96 = vpack.c.b16 %v85, %v84
  %v97 = vpack.c.b16 %v87, %v86
  %v98 = vpack.c.b16 %v89, %v88
  %v99 = vpack.c.b16 %v91, %v90
  %v108 = vunpack.c.l.b16 %v46
  %v109 = vunpack.c.h.b16 %v46
  %v110 = vunpack.c.l.b16 %v47
  %v111 = vunpack.c.h.b16 %v47
  %v112 = vunpack.c.l.b16 %v48
  %v113 = vunpack.c.h.b16 %v48
  %v114 = vunpack.c.l.b16 %v49
  %v115 = vunpack.c.h.b16 %v49
  %v116 = vunpack.c.l.b16 %v50
  %v117 = vunpack.c.h.b16 %v50
  %v118 = vunpack.c.l.b16 %v51
  %v119 = vunpack.c.h.b16 %v51
  %v120 = vunpack.c.l.b16 %v52
  %v121 = vunpack.c.h.b16 %v52
  %v122 = vunpack.c.l.b16 %v53
  %v123 = vunpack.c.h.b16 %v53
  %v124 = vpack.c.b16 %v110, %v108
  %v125 = vpack.c.b16 %v111, %v109
  %v126 = vpack.c.b16 %v114, %v112
  %v127 = vpack.c.b16 %v115, %v113
  %v128 = vpack.c.b16 %v118, %v116
  %v129 = vpack.c.b16 %v119, %v117
  %v130 = vpack.c.b16 %v122, %v120
  %v131 = vpack.c.b16 %v123, %v121
  %vm140 = vcmask 523264
  %v142 = vsel %vm140, %v92, 0
  %v145 = vsel %vm140, %v93, 0
  %v148 = vsel %vm140, %v94, 0
  %v151 = vsel %vm140, %v95, 0
  %v154 = vsel %vm140, %v96, 0
  %v157 = vsel %vm140, %v97, 0
  %v160 = vsel %vm140, %v98, 0
  %v163 = vsel %vm140, %v99, 0
  %165 = vmatpush.bf16.msra.mxu0 0
  %166 = vmatpush.bf16.msra.mxu0 0
  %167 = vmatpush.bf16.msra.mxu0 0
  %168 = vmatpush.bf16.msra.mxu0 0
  %169 = vmatpush.bf16.msra.mxu0 %v130
  %170 = vmatpush.bf16.msra.mxu0 %v128
  %171 = vmatpush.bf16.msra.mxu0 %v126
  %172 = vmatpush.bf16.msra.mxu0 %v124
  %173 = vmatmul.bf16.gmra.mxu0 %v142
  %v174 = vpop.f32.mrf.mxu0
  %v175 = vadd.f32 %v56, %v174
  %v176 = vpop.f32.mrf.mxu0
  %v177 = vadd.f32 %v56, %v176
  %178 = vmatmul.bf16.gmra.mxu0 %v145
  %v179 = vpop.f32.mrf.mxu0
  %v180 = vadd.f32 %v56, %v179
  %v181 = vpop.f32.mrf.mxu0
  %v182 = vadd.f32 %v56, %v181
  %183 = vmatmul.bf16.gmra.mxu0 %v148
  %v184 = vpop.f32.mrf.mxu0
  %v185 = vadd.f32 %v56, %v184
  %v186 = vpop.f32.mrf.mxu0
  %v187 = vadd.f32 %v56, %v186
  %188 = vmatmul.bf16.gmra.mxu0 %v151
  %v189 = vpop.f32.mrf.mxu0
  %v190 = vadd.f32 %v56, %v189
  %v191 = vpop.f32.mrf.mxu0
  %v192 = vadd.f32 %v56, %v191
  %193 = vmatmul.bf16.gmra.mxu0 %v154
  %v194 = vpop.f32.mrf.mxu0
  %v195 = vadd.f32 %v56, %v194
  %v196 = vpop.f32.mrf.mxu0
  %v197 = vadd.f32 %v56, %v196
  %198 = vmatmul.bf16.gmra.mxu0 %v157
  %v199 = vpop.f32.mrf.mxu0
  %v200 = vadd.f32 %v56, %v199
  %v201 = vpop.f32.mrf.mxu0
  %v202 = vadd.f32 %v56, %v201
  %203 = vmatmul.bf16.gmra.mxu0 %v160
  %v204 = vpop.f32.mrf.mxu0
  %v205 = vadd.f32 %v56, %v204
  %v206 = vpop.f32.mrf.mxu0
  %v207 = vadd.f32 %v56, %v206
  %208 = vmatmul.bf16.gmra.mxu0 %v163
  %v209 = vpop.f32.mrf.mxu0
  %v210 = vadd.f32 %v56, %v209
  %v211 = vpop.f32.mrf.mxu0
  %v212 = vadd.f32 %v56, %v211
  %213 = vdwg.mxu0
  %214 = vmatpush.bf16.msra.mxu0 0
  %215 = vmatpush.bf16.msra.mxu0 0
  %216 = vmatpush.bf16.msra.mxu0 0
  %217 = vmatpush.bf16.msra.mxu0 0
  %218 = vmatpush.bf16.msra.mxu0 %v131
  %219 = vmatpush.bf16.msra.mxu0 %v129
  %220 = vmatpush.bf16.msra.mxu0 %v127
  %221 = vmatpush.bf16.msra.mxu0 %v125
  %222 = vmatmul.bf16.gmra.mxu0 %v142
  %v223 = vpop.f32.mrf.mxu0
  %v224 = vadd.f32 %v57, %v223
  %v225 = vpop.f32.mrf.mxu0
  %v226 = vadd.f32 %v57, %v225
  %227 = vmatmul.bf16.gmra.mxu0 %v145
  %v228 = vpop.f32.mrf.mxu0
  %v229 = vadd.f32 %v57, %v228
  %v230 = vpop.f32.mrf.mxu0
  %v231 = vadd.f32 %v57, %v230
  %232 = vmatmul.bf16.gmra.mxu0 %v148
  %v233 = vpop.f32.mrf.mxu0
  %v234 = vadd.f32 %v57, %v233
  %v235 = vpop.f32.mrf.mxu0
  %v236 = vadd.f32 %v57, %v235
  %237 = vmatmul.bf16.gmra.mxu0 %v151
  %v238 = vpop.f32.mrf.mxu0
  %v239 = vadd.f32 %v57, %v238
  %v240 = vpop.f32.mrf.mxu0
  %v241 = vadd.f32 %v57, %v240
  %242 = vmatmul.bf16.gmra.mxu0 %v154
  %v243 = vpop.f32.mrf.mxu0
  %v244 = vadd.f32 %v57, %v243
  %v245 = vpop.f32.mrf.mxu0
  %v246 = vadd.f32 %v57, %v245
  %247 = vmatmul.bf16.gmra.mxu0 %v157
  %v248 = vpop.f32.mrf.mxu0
  %v249 = vadd.f32 %v57, %v248
  %v250 = vpop.f32.mrf.mxu0
  %v251 = vadd.f32 %v57, %v250
  %252 = vmatmul.bf16.gmra.mxu0 %v160
  %v253 = vpop.f32.mrf.mxu0
  %v254 = vadd.f32 %v57, %v253
  %v255 = vpop.f32.mrf.mxu0
  %v256 = vadd.f32 %v57, %v255
  %257 = vmatmul.bf16.gmra.mxu0 %v163
  %v258 = vpop.f32.mrf.mxu0
  %v259 = vadd.f32 %v57, %v258
  %v260 = vpop.f32.mrf.mxu0
  %v261 = vadd.f32 %v57, %v260
  %262 = vdwg.mxu0
  %v263 = vmax.f32 %v175, 0.0
  %v264 = vmax.f32 %v224, 0.0
  %v265 = vmax.f32 %v177, 0.0
  %v266 = vmax.f32 %v226, 0.0
  %v267 = vmax.f32 %v180, 0.0
  %v268 = vmax.f32 %v229, 0.0
  %v269 = vmax.f32 %v182, 0.0
  %v270 = vmax.f32 %v231, 0.0
  %v271 = vmax.f32 %v185, 0.0
  %v272 = vmax.f32 %v234, 0.0
  %v273 = vmax.f32 %v187, 0.0
  %v274 = vmax.f32 %v236, 0.0
  %v275 = vmax.f32 %v190, 0.0
  %v276 = vmax.f32 %v239, 0.0
  %v277 = vmax.f32 %v192, 0.0
  %v278 = vmax.f32 %v241, 0.0
  %v279 = vmax.f32 %v195, 0.0
  %v280 = vmax.f32 %v244, 0.0
  %v281 = vmax.f32 %v197, 0.0
  %v282 = vmax.f32 %v246, 0.0
  %v283 = vmax.f32 %v200, 0.0
  %v284 = vmax.f32 %v249, 0.0
  %v285 = vmax.f32 %v202, 0.0
  %v286 = vmax.f32 %v251, 0.0
  %v287 = vmax.f32 %v205, 0.0
  %v288 = vmax.f32 %v254, 0.0
  %v289 = vmax.f32 %v207, 0.0
  %v290 = vmax.f32 %v256, 0.0
  %v291 = vmax.f32 %v210, 0.0
  %v292 = vmax.f32 %v259, 0.0
  %v293 = vmax.f32 %v212, 0.0
  %v294 = vmax.f32 %v261, 0.0
  %v295 = vpack.c.bf16 %v264, %v263
  %v296 = vpack.c.bf16 %v266, %v265
  %v297 = vpack.c.bf16 %v268, %v267
  %v298 = vpack.c.bf16 %v270, %v269
  %v299 = vpack.c.bf16 %v272, %v271
  %v300 = vpack.c.bf16 %v274, %v273
  %v301 = vpack.c.bf16 %v276, %v275
  %v302 = vpack.c.bf16 %v278, %v277
  %v303 = vpack.c.bf16 %v280, %v279
  %v304 = vpack.c.bf16 %v282, %v281
  %v305 = vpack.c.bf16 %v284, %v283
  %v306 = vpack.c.bf16 %v286, %v285
  %v307 = vpack.c.bf16 %v288, %v287
  %v308 = vpack.c.bf16 %v290, %v289
  %v309 = vpack.c.bf16 %v292, %v291
  %v310 = vpack.c.bf16 %v294, %v293
  %311 = vst [vmem:[#allocation2] sm:$0xff] %v295
  %312 = vst [vmem:[#allocation2 + $0x8] sm:$0xff] %v296
  %313 = vst [vmem:[#allocation2 + $0x10] sm:$0xff] %v297
  %314 = vst [vmem:[#allocation2 + $0x18] sm:$0xff] %v298
  %315 = vst [vmem:[#allocation2 + $0x20] sm:$0xff] %v299
  %316 = vst [vmem:[#allocation2 + $0x28] sm:$0xff] %v300
  %317 = vst [vmem:[#allocation2 + $0x30] sm:$0xff] %v301
  %318 = vst [vmem:[#allocation2 + $0x38] sm:$0xff] %v302
  %319 = vst [vmem:[#allocation2 + $0x40] sm:$0xff] %v303
  %320 = vst [vmem:[#allocation2 + $0x48] sm:$0xff] %v304
  %321 = vst [vmem:[#allocation2 + $0x50] sm:$0xff] %v305
  %322 = vst [vmem:[#allocation2 + $0x58] sm:$0xff] %v306
  %323 = vst [vmem:[#allocation2 + $0x60] sm:$0xff] %v307
  %324 = vst [vmem:[#allocation2 + $0x68] sm:$0xff] %v308
  %325 = vst [vmem:[#allocation2 + $0x70] sm:$0xff] %v309
  %326 = vst [vmem:[#allocation2 + $0x78] sm:$0xff] %v310
  %v327 = vld [vmem:[#allocation2] sm:$0xff]
  %v328 = vld [vmem:[#allocation2 + $0x8] sm:$0xff]
  %v329 = vld [vmem:[#allocation2 + $0x10] sm:$0xff]
  %v330 = vld [vmem:[#allocation2 + $0x18] sm:$0xff]
  %v331 = vld [vmem:[#allocation2 + $0x20] sm:$0xff]
  %v332 = vld [vmem:[#allocation2 + $0x28] sm:$0xff]
  %v333 = vld [vmem:[#allocation2 + $0x30] sm:$0xff]
  %v334 = vld [vmem:[#allocation2 + $0x38] sm:$0xff]
  %v335 = vld [vmem:[%s3] sm:$0xff]
  %v336 = vld [vmem:[%s3 + $0x8] sm:$0xff]
  %v337 = vld [vmem:[%s3 + $0x10] sm:$0xff]
  %v338 = vld [vmem:[%s3 + $0x18] sm:$0xff]
  %v339 = vld [vmem:[%s3 + $0x20] sm:$0xff]
  %v340 = vld [vmem:[%s3 + $0x28] sm:$0xff]
  %v341 = vld [vmem:[%s3 + $0x30] sm:$0xff]
  %v342 = vld [vmem:[%s3 + $0x38] sm:$0xff]
  %v343 = vld [vmem:[%s3 + $0x40] sm:$0xff]
  %v344 = vld [vmem:[%s3 + $0x48] sm:$0xff]
  %v345 = vld [vmem:[%s3 + $0x50] sm:$0xff]
  %v346 = vld [vmem:[%s3 + $0x58] sm:$0xff]
  %v347 = vld [vmem:[%s3 + $0x60] sm:$0xff]
  %v348 = vld [vmem:[%s3 + $0x68] sm:$0xff]
  %v349 = vld [vmem:[%s3 + $0x70] sm:$0xff]
  %v350 = vld [vmem:[%s3 + $0x78] sm:$0xff]
  %v351 = vld [vmem:[%s3 + $0x80] sm:$0xff]
  %v352 = vld [vmem:[%s3 + $0x88] sm:$0xff]
  %v353 = vld [vmem:[%s3 + $0x90] sm:$0xff]
  %v354 = vld [vmem:[%s3 + $0x98] sm:$0xff]
  %v355 = vld [vmem:[%s3 + $0xa0] sm:$0xff]
  %v356 = vld [vmem:[%s3 + $0xa8] sm:$0xff]
  %v357 = vld [vmem:[%s3 + $0xb0] sm:$0xff]
  %v358 = vld [vmem:[%s3 + $0xb8] sm:$0xff]
  %v359 = vld [vmem:[%s3 + $0xc0] sm:$0xff]
  %v360 = vld [vmem:[%s3 + $0xc8] sm:$0xff]
  %v361 = vld [vmem:[%s3 + $0xd0] sm:$0xff]
  %v362 = vld [vmem:[%s3 + $0xd8] sm:$0xff]
  %v363 = vld [vmem:[%s3 + $0xe0] sm:$0xff]
  %v364 = vld [vmem:[%s3 + $0xe8] sm:$0xff]
  %v365 = vld [vmem:[%s3 + $0xf0] sm:$0xff]
  %v366 = vld [vmem:[%s3 + $0xf8] sm:$0xff]
  %v367 = vld [vmem:[#allocation2 + $0x40] sm:$0xff]
  %v368 = vld [vmem:[#allocation2 + $0x48] sm:$0xff]
  %s369 = scalar_lea.vmem %s3, 256
  %v370 = vld [vmem:[%s369] sm:$0xff]
  %v371 = vld [vmem:[%s369 + $0x8] sm:$0xff]
  %v372 = vld [vmem:[%s369 + $0x10] sm:$0xff]
  %v373 = vld [vmem:[%s369 + $0x18] sm:$0xff]
  %v374 = vld [vmem:[%s369 + $0x20] sm:$0xff]
  %v375 = vld [vmem:[%s369 + $0x28] sm:$0xff]
  %v376 = vld [vmem:[%s369 + $0x30] sm:$0xff]
  %v377 = vld [vmem:[%s369 + $0x38] sm:$0xff]
  %v378 = vld [vmem:[%s369 + $0x40] sm:$0xff]
  %v379 = vld [vmem:[%s369 + $0x48] sm:$0xff]
  %v380 = vld [vmem:[%s369 + $0x50] sm:$0xff]
  %v381 = vld [vmem:[%s369 + $0x58] sm:$0xff]
  %v382 = vld [vmem:[%s369 + $0x60] sm:$0xff]
  %v383 = vld [vmem:[%s369 + $0x68] sm:$0xff]
  %v384 = vld [vmem:[%s369 + $0x70] sm:$0xff]
  %v385 = vld [vmem:[%s369 + $0x78] sm:$0xff]
  %v386 = vld [vmem:[%s369 + $0x80] sm:$0xff]
  %v387 = vld [vmem:[%s369 + $0x88] sm:$0xff]
  %v388 = vld [vmem:[%s369 + $0x90] sm:$0xff]
  %v389 = vld [vmem:[%s369 + $0x98] sm:$0xff]
  %v390 = vld [vmem:[%s369 + $0xa0] sm:$0xff]
  %v391 = vld [vmem:[%s369 + $0xa8] sm:$0xff]
  %v392 = vld [vmem:[%s369 + $0xb0] sm:$0xff]
  %v393 = vld [vmem:[%s369 + $0xb8] sm:$0xff]
  %v394 = vld [vmem:[%s369 + $0xc0] sm:$0xff]
  %v395 = vld [vmem:[%s369 + $0xc8] sm:$0xff]
  %v396 = vld [vmem:[%s369 + $0xd0] sm:$0xff]
  %v397 = vld [vmem:[%s369 + $0xd8] sm:$0xff]
  %v398 = vld [vmem:[%s369 + $0xe0] sm:$0xff]
  %v399 = vld [vmem:[%s369 + $0xe8] sm:$0xff]
  %v400 = vld [vmem:[%s369 + $0xf0] sm:$0xff]
  %v401 = vld [vmem:[%s369 + $0xf8] sm:$0xff]
  %v410 = vunpack.c.l.b16 %v329
  %v411 = vunpack.c.h.b16 %v329
  %v412 = vunpack.c.l.b16 %v330
  %v413 = vunpack.c.h.b16 %v330
  %v414 = vunpack.c.l.b16 %v331
  %v415 = vunpack.c.h.b16 %v331
  %v416 = vunpack.c.l.b16 %v332
  %v417 = vunpack.c.h.b16 %v332
  %v418 = vunpack.c.l.b16 %v333
  %v419 = vunpack.c.h.b16 %v333
  %v420 = vunpack.c.l.b16 %v334
  %v421 = vunpack.c.h.b16 %v334
  %v422 = vunpack.c.l.b16 %v367
  %v423 = vunpack.c.h.b16 %v367
  %v424 = vunpack.c.l.b16 %v368
  %v425 = vunpack.c.h.b16 %v368
  %v426 = vpack.c.b16 %v412, %v410
  %v427 = vpack.c.b16 %v413, %v411
  %v428 = vpack.c.b16 %v416, %v414
  %v429 = vpack.c.b16 %v417, %v415
  %v430 = vpack.c.b16 %v420, %v418
  %v431 = vpack.c.b16 %v421, %v419
  %v432 = vpack.c.b16 %v424, %v422
  %v433 = vpack.c.b16 %v425, %v423
  %v474 = vunpack.c.l.b16 %v370
  %v475 = vunpack.c.h.b16 %v370
  %v476 = vunpack.c.l.b16 %v371
  %v477 = vunpack.c.h.b16 %v371
  %v478 = vunpack.c.l.b16 %v372
  %v479 = vunpack.c.h.b16 %v372
  %v480 = vunpack.c.l.b16 %v373
  %v481 = vunpack.c.h.b16 %v373
  %v482 = vunpack.c.l.b16 %v374
  %v483 = vunpack.c.h.b16 %v374
  %v484 = vunpack.c.l.b16 %v375
  %v485 = vunpack.c.h.b16 %v375
  %v486 = vunpack.c.l.b16 %v376
  %v487 = vunpack.c.h.b16 %v376
  %v488 = vunpack.c.l.b16 %v377
  %v489 = vunpack.c.h.b16 %v377
  %v490 = vunpack.c.l.b16 %v378
  %v491 = vunpack.c.h.b16 %v378
  %v492 = vunpack.c.l.b16 %v379
  %v493 = vunpack.c.h.b16 %v379
  %v494 = vunpack.c.l.b16 %v380
  %v495 = vunpack.c.h.b16 %v380
  %v496 = vunpack.c.l.b16 %v381
  %v497 = vunpack.c.h.b16 %v381
  %v498 = vunpack.c.l.b16 %v382
  %v499 = vunpack.c.h.b16 %v382
  %v500 = vunpack.c.l.b16 %v383
  %v501 = vunpack.c.h.b16 %v383
  %v502 = vunpack.c.l.b16 %v384
  %v503 = vunpack.c.h.b16 %v384
  %v504 = vunpack.c.l.b16 %v385
  %v505 = vunpack.c.h.b16 %v385
  %v506 = vunpack.c.l.b16 %v386
  %v507 = vunpack.c.h.b16 %v386
  %v508 = vunpack.c.l.b16 %v387
  %v509 = vunpack.c.h.b16 %v387
  %v510 = vunpack.c.l.b16 %v388
  %v511 = vunpack.c.h.b16 %v388
  %v512 = vunpack.c.l.b16 %v389
  %v513 = vunpack.c.h.b16 %v389
  %v514 = vunpack.c.l.b16 %v390
  %v515 = vunpack.c.h.b16 %v390
  %v516 = vunpack.c.l.b16 %v391
  %v517 = vunpack.c.h.b16 %v391
  %v518 = vunpack.c.l.b16 %v392
  %v519 = vunpack.c.h.b16 %v392
  %v520 = vunpack.c.l.b16 %v393
  %v521 = vunpack.c.h.b16 %v393
  %v522 = vunpack.c.l.b16 %v394
  %v523 = vunpack.c.h.b16 %v394
  %v524 = vunpack.c.l.b16 %v395
  %v525 = vunpack.c.h.b16 %v395
  %v526 = vunpack.c.l.b16 %v396
  %v527 = vunpack.c.h.b16 %v396
  %v528 = vunpack.c.l.b16 %v397
  %v529 = vunpack.c.h.b16 %v397
  %v530 = vunpack.c.l.b16 %v398
  %v531 = vunpack.c.h.b16 %v398
  %v532 = vunpack.c.l.b16 %v399
  %v533 = vunpack.c.h.b16 %v399
  %v534 = vunpack.c.l.b16 %v400
  %v535 = vunpack.c.h.b16 %v400
  %v536 = vunpack.c.l.b16 %v401
  %v537 = vunpack.c.h.b16 %v401
  %v538 = vpack.c.b16 %v476, %v474
  %v539 = vpack.c.b16 %v477, %v475
  %v540 = vpack.c.b16 %v480, %v478
  %v541 = vpack.c.b16 %v481, %v479
  %v542 = vpack.c.b16 %v484, %v482
  %v543 = vpack.c.b16 %v485, %v483
  %v544 = vpack.c.b16 %v488, %v486
  %v545 = vpack.c.b16 %v489, %v487
  %v546 = vpack.c.b16 %v492, %v490
  %v547 = vpack.c.b16 %v493, %v491
  %v548 = vpack.c.b16 %v496, %v494
  %v549 = vpack.c.b16 %v497, %v495
  %v550 = vpack.c.b16 %v500, %v498
  %v551 = vpack.c.b16 %v501, %v499
  %v552 = vpack.c.b16 %v504, %v502
  %v553 = vpack.c.b16 %v505, %v503
  %v554 = vpack.c.b16 %v508, %v506
  %v555 = vpack.c.b16 %v509, %v507
  %v556 = vpack.c.b16 %v512, %v510
  %v557 = vpack.c.b16 %v513, %v511
  %v558 = vpack.c.b16 %v516, %v514
  %v559 = vpack.c.b16 %v517, %v515
  %v560 = vpack.c.b16 %v520, %v518
  %v561 = vpack.c.b16 %v521, %v519
  %v562 = vpack.c.b16 %v524, %v522
  %v563 = vpack.c.b16 %v525, %v523
  %v564 = vpack.c.b16 %v528, %v526
  %v565 = vpack.c.b16 %v529, %v527
  %v566 = vpack.c.b16 %v532, %v530
  %v567 = vpack.c.b16 %v533, %v531
  %v568 = vpack.c.b16 %v536, %v534
  %v569 = vpack.c.b16 %v537, %v535
  %602 = vmatpush.bf16.msra.mxu0 %v552
  %603 = vmatpush.bf16.msra.mxu0 %v550
  %604 = vmatpush.bf16.msra.mxu0 %v548
  %605 = vmatpush.bf16.msra.mxu0 %v546
  %606 = vmatpush.bf16.msra.mxu0 %v544
  %607 = vmatpush.bf16.msra.mxu0 %v542
  %608 = vmatpush.bf16.msra.mxu0 %v540
  %609 = vmatpush.bf16.msra.mxu0 %v538
  %610 = vmatmul.bf16.gmra.mxu0 %v426
  %v611 = vpop.f32.mrf.mxu0
  %v612 = vadd.f32 0.0, %v611
  %v613 = vpop.f32.mrf.mxu0
  %v614 = vadd.f32 0.0, %v613
  %615 = vmatmul.bf16.gmra.mxu0 %v428
  %v616 = vpop.f32.mrf.mxu0
  %v617 = vadd.f32 0.0, %v616
  %v618 = vpop.f32.mrf.mxu0
  %v619 = vadd.f32 0.0, %v618
  %620 = vmatmul.bf16.gmra.mxu0 %v430
  %v621 = vpop.f32.mrf.mxu0
  %v622 = vadd.f32 0.0, %v621
  %v623 = vpop.f32.mrf.mxu0
  %v624 = vadd.f32 0.0, %v623
  %625 = vmatmul.bf16.gmra.mxu0 %v432
  %v626 = vpop.f32.mrf.mxu0
  %v627 = vadd.f32 0.0, %v626
  %v628 = vpop.f32.mrf.mxu0
  %v629 = vadd.f32 0.0, %v628
  %630 = vdwg.mxu0
  %631 = vmatpush.bf16.msra.mxu0 %v568
  %632 = vmatpush.bf16.msra.mxu0 %v566
  %633 = vmatpush.bf16.msra.mxu0 %v564
  %634 = vmatpush.bf16.msra.mxu0 %v562
  %635 = vmatpush.bf16.msra.mxu0 %v560
  %636 = vmatpush.bf16.msra.mxu0 %v558
  %637 = vmatpush.bf16.msra.mxu0 %v556
  %638 = vmatpush.bf16.msra.mxu0 %v554
  %639 = vmatmul.bf16.gmra.mxu0 %v427
  %v640 = vpop.f32.mrf.mxu0
  %v641 = vadd.f32 %v612, %v640
  %v642 = vpop.f32.mrf.mxu0
  %v643 = vadd.f32 %v614, %v642
  %644 = vmatmul.bf16.gmra.mxu0 %v429
  %v645 = vpop.f32.mrf.mxu0
  %v646 = vadd.f32 %v617, %v645
  %v647 = vpop.f32.mrf.mxu0
  %v648 = vadd.f32 %v619, %v647
  %649 = vmatmul.bf16.gmra.mxu0 %v431
  %v650 = vpop.f32.mrf.mxu0
  %v651 = vadd.f32 %v622, %v650
  %v652 = vpop.f32.mrf.mxu0
  %v653 = vadd.f32 %v624, %v652
  %654 = vmatmul.bf16.gmra.mxu0 %v433
  %v655 = vpop.f32.mrf.mxu0
  %v656 = vadd.f32 %v627, %v655
  %v657 = vpop.f32.mrf.mxu0
  %v658 = vadd.f32 %v629, %v657
  %659 = vdwg.mxu0
  %660 = vmatpush.bf16.msra.mxu0 %v553
  %661 = vmatpush.bf16.msra.mxu0 %v551
  %662 = vmatpush.bf16.msra.mxu0 %v549
  %663 = vmatpush.bf16.msra.mxu0 %v547
  %664 = vmatpush.bf16.msra.mxu0 %v545
  %665 = vmatpush.bf16.msra.mxu0 %v543
  %666 = vmatpush.bf16.msra.mxu0 %v541
  %667 = vmatpush.bf16.msra.mxu0 %v539
  %668 = vmatmul.bf16.gmra.mxu0 %v426
  %v669 = vpop.f32.mrf.mxu0
  %v670 = vadd.f32 0.0, %v669
  %v671 = vpop.f32.mrf.mxu0
  %v672 = vadd.f32 0.0, %v671
  %673 = vmatmul.bf16.gmra.mxu0 %v428
  %v674 = vpop.f32.mrf.mxu0
  %v675 = vadd.f32 0.0, %v674
  %v676 = vpop.f32.mrf.mxu0
  %v677 = vadd.f32 0.0, %v676
  %678 = vmatmul.bf16.gmra.mxu0 %v430
  %v679 = vpop.f32.mrf.mxu0
  %v680 = vadd.f32 0.0, %v679
  %v681 = vpop.f32.mrf.mxu0
  %v682 = vadd.f32 0.0, %v681
  %683 = vmatmul.bf16.gmra.mxu0 %v432
  %v684 = vpop.f32.mrf.mxu0
  %v685 = vadd.f32 0.0, %v684
  %v686 = vpop.f32.mrf.mxu0
  %v687 = vadd.f32 0.0, %v686
  %688 = vdwg.mxu0
  %689 = vmatpush.bf16.msra.mxu0 %v569
  %690 = vmatpush.bf16.msra.mxu0 %v567
  %691 = vmatpush.bf16.msra.mxu0 %v565
  %692 = vmatpush.bf16.msra.mxu0 %v563
  %693 = vmatpush.bf16.msra.mxu0 %v561
  %694 = vmatpush.bf16.msra.mxu0 %v559
  %695 = vmatpush.bf16.msra.mxu0 %v557
  %696 = vmatpush.bf16.msra.mxu0 %v555
  %697 = vmatmul.bf16.gmra.mxu0 %v427
  %v698 = vpop.f32.mrf.mxu0
  %v699 = vadd.f32 %v670, %v698
  %v700 = vpop.f32.mrf.mxu0
  %v701 = vadd.f32 %v672, %v700
  %702 = vmatmul.bf16.gmra.mxu0 %v429
  %v703 = vpop.f32.mrf.mxu0
  %v704 = vadd.f32 %v675, %v703
  %v705 = vpop.f32.mrf.mxu0
  %v706 = vadd.f32 %v677, %v705
  %707 = vmatmul.bf16.gmra.mxu0 %v431
  %v708 = vpop.f32.mrf.mxu0
  %v709 = vadd.f32 %v680, %v708
  %v710 = vpop.f32.mrf.mxu0
  %v711 = vadd.f32 %v682, %v710
  %712 = vmatmul.bf16.gmra.mxu0 %v433
  %v713 = vpop.f32.mrf.mxu0
  %v714 = vadd.f32 %v685, %v713
  %v715 = vpop.f32.mrf.mxu0
  %v716 = vadd.f32 %v687, %v715
  %717 = vdwg.mxu0
  %v720 = vunpack.c.l.b16 %v327
  %v721 = vunpack.c.h.b16 %v327
  %v722 = vunpack.c.l.b16 %v328
  %v723 = vunpack.c.h.b16 %v328
  %v724 = vpack.c.b16 %v722, %v720
  %v725 = vpack.c.b16 %v723, %v721
  %v760 = vunpack.c.l.b16 %v335
  %v761 = vunpack.c.h.b16 %v335
  %v762 = vunpack.c.l.b16 %v336
  %v763 = vunpack.c.h.b16 %v336
  %v764 = vunpack.c.l.b16 %v337
  %v765 = vunpack.c.h.b16 %v337
  %v766 = vunpack.c.l.b16 %v338
  %v767 = vunpack.c.h.b16 %v338
  %v768 = vunpack.c.l.b16 %v339
  %v769 = vunpack.c.h.b16 %v339
  %v770 = vunpack.c.l.b16 %v340
  %v771 = vunpack.c.h.b16 %v340
  %v772 = vunpack.c.l.b16 %v341
  %v773 = vunpack.c.h.b16 %v341
  %v774 = vunpack.c.l.b16 %v342
  %v775 = vunpack.c.h.b16 %v342
  %v776 = vunpack.c.l.b16 %v343
  %v777 = vunpack.c.h.b16 %v343
  %v778 = vunpack.c.l.b16 %v344
  %v779 = vunpack.c.h.b16 %v344
  %v780 = vunpack.c.l.b16 %v345
  %v781 = vunpack.c.h.b16 %v345
  %v782 = vunpack.c.l.b16 %v346
  %v783 = vunpack.c.h.b16 %v346
  %v784 = vunpack.c.l.b16 %v347
  %v785 = vunpack.c.h.b16 %v347
  %v786 = vunpack.c.l.b16 %v348
  %v787 = vunpack.c.h.b16 %v348
  %v788 = vunpack.c.l.b16 %v349
  %v789 = vunpack.c.h.b16 %v349
  %v790 = vunpack.c.l.b16 %v350
  %v791 = vunpack.c.h.b16 %v350
  %v792 = vunpack.c.l.b16 %v351
  %v793 = vunpack.c.h.b16 %v351
  %v794 = vunpack.c.l.b16 %v352
  %v795 = vunpack.c.h.b16 %v352
  %v796 = vunpack.c.l.b16 %v353
  %v797 = vunpack.c.h.b16 %v353
  %v798 = vunpack.c.l.b16 %v354
  %v799 = vunpack.c.h.b16 %v354
  %v800 = vunpack.c.l.b16 %v355
  %v801 = vunpack.c.h.b16 %v355
  %v802 = vunpack.c.l.b16 %v356
  %v803 = vunpack.c.h.b16 %v356
  %v804 = vunpack.c.l.b16 %v357
  %v805 = vunpack.c.h.b16 %v357
  %v806 = vunpack.c.l.b16 %v358
  %v807 = vunpack.c.h.b16 %v358
  %v808 = vunpack.c.l.b16 %v359
  %v809 = vunpack.c.h.b16 %v359
  %v810 = vunpack.c.l.b16 %v360
  %v811 = vunpack.c.h.b16 %v360
  %v812 = vunpack.c.l.b16 %v361
  %v813 = vunpack.c.h.b16 %v361
  %v814 = vunpack.c.l.b16 %v362
  %v815 = vunpack.c.h.b16 %v362
  %v816 = vunpack.c.l.b16 %v363
  %v817 = vunpack.c.h.b16 %v363
  %v818 = vunpack.c.l.b16 %v364
  %v819 = vunpack.c.h.b16 %v364
  %v820 = vunpack.c.l.b16 %v365
  %v821 = vunpack.c.h.b16 %v365
  %v822 = vunpack.c.l.b16 %v366
  %v823 = vunpack.c.h.b16 %v366
  %v824 = vpack.c.b16 %v762, %v760
  %v825 = vpack.c.b16 %v763, %v761
  %v826 = vpack.c.b16 %v766, %v764
  %v827 = vpack.c.b16 %v767, %v765
  %v828 = vpack.c.b16 %v770, %v768
  %v829 = vpack.c.b16 %v771, %v769
  %v830 = vpack.c.b16 %v774, %v772
  %v831 = vpack.c.b16 %v775, %v773
  %v832 = vpack.c.b16 %v778, %v776
  %v833 = vpack.c.b16 %v779, %v777
  %v834 = vpack.c.b16 %v782, %v780
  %v835 = vpack.c.b16 %v783, %v781
  %v836 = vpack.c.b16 %v786, %v784
  %v837 = vpack.c.b16 %v787, %v785
  %v838 = vpack.c.b16 %v790, %v788
  %v839 = vpack.c.b16 %v791, %v789
  %v840 = vpack.c.b16 %v794, %v792
  %v841 = vpack.c.b16 %v795, %v793
  %v842 = vpack.c.b16 %v798, %v796
  %v843 = vpack.c.b16 %v799, %v797
  %v844 = vpack.c.b16 %v802, %v800
  %v845 = vpack.c.b16 %v803, %v801
  %v846 = vpack.c.b16 %v806, %v804
  %v847 = vpack.c.b16 %v807, %v805
  %v848 = vpack.c.b16 %v810, %v808
  %v849 = vpack.c.b16 %v811, %v809
  %v850 = vpack.c.b16 %v814, %v812
  %v851 = vpack.c.b16 %v815, %v813
  %v852 = vpack.c.b16 %v818, %v816
  %v853 = vpack.c.b16 %v819, %v817
  %v854 = vpack.c.b16 %v822, %v820
  %v855 = vpack.c.b16 %v823, %v821
  %888 = vmatpush.bf16.msra.mxu0 %v838
  %889 = vmatpush.bf16.msra.mxu0 %v836
  %890 = vmatpush.bf16.msra.mxu0 %v834
  %891 = vmatpush.bf16.msra.mxu0 %v832
  %892 = vmatpush.bf16.msra.mxu0 %v830
  %893 = vmatpush.bf16.msra.mxu0 %v828
  %894 = vmatpush.bf16.msra.mxu0 %v826
  %895 = vmatpush.bf16.msra.mxu0 %v824
  %896 = vmatmul.bf16.gmra.mxu0 %v724
  %v897 = vpop.f32.mrf.mxu0
  %v898 = vadd.f32 %v641, %v897
  %v899 = vpop.f32.mrf.mxu0
  %v900 = vadd.f32 %v643, %v899
  %901 = vmatmul.bf16.gmra.mxu0 %v426
  %v902 = vpop.f32.mrf.mxu0
  %v903 = vadd.f32 %v646, %v902
  %v904 = vpop.f32.mrf.mxu0
  %v905 = vadd.f32 %v648, %v904
  %906 = vmatmul.bf16.gmra.mxu0 %v428
  %v907 = vpop.f32.mrf.mxu0
  %v908 = vadd.f32 %v651, %v907
  %v909 = vpop.f32.mrf.mxu0
  %v910 = vadd.f32 %v653, %v909
  %911 = vmatmul.bf16.gmra.mxu0 %v430
  %v912 = vpop.f32.mrf.mxu0
  %v913 = vadd.f32 %v656, %v912
  %v914 = vpop.f32.mrf.mxu0
  %v915 = vadd.f32 %v658, %v914
  %916 = vdwg.mxu0
  %917 = vmatpush.bf16.msra.mxu0 %v854
  %918 = vmatpush.bf16.msra.mxu0 %v852
  %919 = vmatpush.bf16.msra.mxu0 %v850
  %920 = vmatpush.bf16.msra.mxu0 %v848
  %921 = vmatpush.bf16.msra.mxu0 %v846
  %922 = vmatpush.bf16.msra.mxu0 %v844
  %923 = vmatpush.bf16.msra.mxu0 %v842
  %924 = vmatpush.bf16.msra.mxu0 %v840
  %925 = vmatmul.bf16.gmra.mxu0 %v725
  %v926 = vpop.f32.mrf.mxu0
  %v927 = vadd.f32 %v898, %v926
  %v928 = vpop.f32.mrf.mxu0
  %v929 = vadd.f32 %v900, %v928
  %930 = vmatmul.bf16.gmra.mxu0 %v427
  %v931 = vpop.f32.mrf.mxu0
  %v932 = vadd.f32 %v903, %v931
  %v933 = vpop.f32.mrf.mxu0
  %v934 = vadd.f32 %v905, %v933
  %935 = vmatmul.bf16.gmra.mxu0 %v429
  %v936 = vpop.f32.mrf.mxu0
  %v937 = vadd.f32 %v908, %v936
  %v938 = vpop.f32.mrf.mxu0
  %v939 = vadd.f32 %v910, %v938
  %940 = vmatmul.bf16.gmra.mxu0 %v431
  %v941 = vpop.f32.mrf.mxu0
  %v942 = vadd.f32 %v913, %v941
  %v943 = vpop.f32.mrf.mxu0
  %v944 = vadd.f32 %v915, %v943
  %945 = vdwg.mxu0
  %946 = vmatpush.bf16.msra.mxu0 %v839
  %947 = vmatpush.bf16.msra.mxu0 %v837
  %948 = vmatpush.bf16.msra.mxu0 %v835
  %949 = vmatpush.bf16.msra.mxu0 %v833
  %950 = vmatpush.bf16.msra.mxu0 %v831
  %951 = vmatpush.bf16.msra.mxu0 %v829
  %952 = vmatpush.bf16.msra.mxu0 %v827
  %953 = vmatpush.bf16.msra.mxu0 %v825
  %954 = vmatmul.bf16.gmra.mxu0 %v724
  %v955 = vpop.f32.mrf.mxu0
  %v956 = vadd.f32 %v699, %v955
  %v957 = vpop.f32.mrf.mxu0
  %v958 = vadd.f32 %v701, %v957
  %959 = vmatmul.bf16.gmra.mxu0 %v426
  %v960 = vpop.f32.mrf.mxu0
  %v961 = vadd.f32 %v704, %v960
  %v962 = vpop.f32.mrf.mxu0
  %v963 = vadd.f32 %v706, %v962
  %964 = vmatmul.bf16.gmra.mxu0 %v428
  %v965 = vpop.f32.mrf.mxu0
  %v966 = vadd.f32 %v709, %v965
  %v967 = vpop.f32.mrf.mxu0
  %v968 = vadd.f32 %v711, %v967
  %969 = vmatmul.bf16.gmra.mxu0 %v430
  %v970 = vpop.f32.mrf.mxu0
  %v971 = vadd.f32 %v714, %v970
  %v972 = vpop.f32.mrf.mxu0
  %v973 = vadd.f32 %v716, %v972
  %974 = vdwg.mxu0
  %975 = vmatpush.bf16.msra.mxu0 %v855
  %976 = vmatpush.bf16.msra.mxu0 %v853
  %977 = vmatpush.bf16.msra.mxu0 %v851
  %978 = vmatpush.bf16.msra.mxu0 %v849
  %979 = vmatpush.bf16.msra.mxu0 %v847
  %980 = vmatpush.bf16.msra.mxu0 %v845
  %981 = vmatpush.bf16.msra.mxu0 %v843
  %982 = vmatpush.bf16.msra.mxu0 %v841
  %983 = vmatmul.bf16.gmra.mxu0 %v725
  %v984 = vpop.f32.mrf.mxu0
  %v985 = vadd.f32 %v956, %v984
  %v986 = vpop.f32.mrf.mxu0
  %v987 = vadd.f32 %v958, %v986
  %988 = vmatmul.bf16.gmra.mxu0 %v427
  %v989 = vpop.f32.mrf.mxu0
  %v990 = vadd.f32 %v961, %v989
  %v991 = vpop.f32.mrf.mxu0
  %v992 = vadd.f32 %v963, %v991
  %993 = vmatmul.bf16.gmra.mxu0 %v429
  %v994 = vpop.f32.mrf.mxu0
  %v995 = vadd.f32 %v966, %v994
  %v996 = vpop.f32.mrf.mxu0
  %v997 = vadd.f32 %v968, %v996
  %998 = vmatmul.bf16.gmra.mxu0 %v431
  %v999 = vpop.f32.mrf.mxu0
  %v1000 = vadd.f32 %v971, %v999
  %v1001 = vpop.f32.mrf.mxu0
  %v1002 = vadd.f32 %v973, %v1001
  %1003 = vdwg.mxu0
  %v1004 = vld [vmem:[#allocation2 + $0x20] sm:$0xff]
  %v1005 = vld [vmem:[#allocation2 + $0x28] sm:$0xff]
  %v1006 = vld [vmem:[#allocation2 + $0x30] sm:$0xff]
  %v1007 = vld [vmem:[#allocation2 + $0x38] sm:$0xff]
  %v1008 = vld [vmem:[#allocation2 + $0x40] sm:$0xff]
  %v1009 = vld [vmem:[#allocation2 + $0x48] sm:$0xff]
  %v1010 = vld [vmem:[#allocation2 + $0x50] sm:$0xff]
  %v1011 = vld [vmem:[#allocation2 + $0x58] sm:$0xff]
  %s1012 = scalar_lea.vmem %s3, 512
  %v1013 = vld [vmem:[%s1012] sm:$0xff]
  %v1014 = vld [vmem:[%s1012 + $0x8] sm:$0xff]
  %v1015 = vld [vmem:[%s1012 + $0x10] sm:$0xff]
  %v1016 = vld [vmem:[%s1012 + $0x18] sm:$0xff]
  %v1017 = vld [vmem:[%s1012 + $0x20] sm:$0xff]
  %v1018 = vld [vmem:[%s1012 + $0x28] sm:$0xff]
  %v1019 = vld [vmem:[%s1012 + $0x30] sm:$0xff]
  %v1020 = vld [vmem:[%s1012 + $0x38] sm:$0xff]
  %v1021 = vld [vmem:[%s1012 + $0x40] sm:$0xff]
  %v1022 = vld [vmem:[%s1012 + $0x48] sm:$0xff]
  %v1023 = vld [vmem:[%s1012 + $0x50] sm:$0xff]
  %v1024 = vld [vmem:[%s1012 + $0x58] sm:$0xff]
  %v1025 = vld [vmem:[%s1012 + $0x60] sm:$0xff]
  %v1026 = vld [vmem:[%s1012 + $0x68] sm:$0xff]
  %v1027 = vld [vmem:[%s1012 + $0x70] sm:$0xff]
  %v1028 = vld [vmem:[%s1012 + $0x78] sm:$0xff]
  %v1029 = vld [vmem:[%s1012 + $0x80] sm:$0xff]
  %v1030 = vld [vmem:[%s1012 + $0x88] sm:$0xff]
  %v1031 = vld [vmem:[%s1012 + $0x90] sm:$0xff]
  %v1032 = vld [vmem:[%s1012 + $0x98] sm:$0xff]
  %v1033 = vld [vmem:[%s1012 + $0xa0] sm:$0xff]
  %v1034 = vld [vmem:[%s1012 + $0xa8] sm:$0xff]
  %v1035 = vld [vmem:[%s1012 + $0xb0] sm:$0xff]
  %v1036 = vld [vmem:[%s1012 + $0xb8] sm:$0xff]
  %v1037 = vld [vmem:[%s1012 + $0xc0] sm:$0xff]
  %v1038 = vld [vmem:[%s1012 + $0xc8] sm:$0xff]
  %v1039 = vld [vmem:[%s1012 + $0xd0] sm:$0xff]
  %v1040 = vld [vmem:[%s1012 + $0xd8] sm:$0xff]
  %v1041 = vld [vmem:[%s1012 + $0xe0] sm:$0xff]
  %v1042 = vld [vmem:[%s1012 + $0xe8] sm:$0xff]
  %v1043 = vld [vmem:[%s1012 + $0xf0] sm:$0xff]
  %v1044 = vld [vmem:[%s1012 + $0xf8] sm:$0xff]
  %v1053 = vunpack.c.l.b16 %v1004
  %v1054 = vunpack.c.h.b16 %v1004
  %v1055 = vunpack.c.l.b16 %v1005
  %v1056 = vunpack.c.h.b16 %v1005
  %v1057 = vunpack.c.l.b16 %v1006
  %v1058 = vunpack.c.h.b16 %v1006
  %v1059 = vunpack.c.l.b16 %v1007
  %v1060 = vunpack.c.h.b16 %v1007
  %v1061 = vunpack.c.l.b16 %v1008
  %v1062 = vunpack.c.h.b16 %v1008
  %v1063 = vunpack.c.l.b16 %v1009
  %v1064 = vunpack.c.h.b16 %v1009
  %v1065 = vunpack.c.l.b16 %v1010
  %v1066 = vunpack.c.h.b16 %v1010
  %v1067 = vunpack.c.l.b16 %v1011
  %v1068 = vunpack.c.h.b16 %v1011
  %v1069 = vpack.c.b16 %v1055, %v1053
  %v1070 = vpack.c.b16 %v1056, %v1054
  %v1071 = vpack.c.b16 %v1059, %v1057
  %v1072 = vpack.c.b16 %v1060, %v1058
  %v1073 = vpack.c.b16 %v1063, %v1061
  %v1074 = vpack.c.b16 %v1064, %v1062
  %v1075 = vpack.c.b16 %v1067, %v1065
  %v1076 = vpack.c.b16 %v1068, %v1066
  %v1117 = vunpack.c.l.b16 %v1013
  %v1118 = vunpack.c.h.b16 %v1013
  %v1119 = vunpack.c.l.b16 %v1014
  %v1120 = vunpack.c.h.b16 %v1014
  %v1121 = vunpack.c.l.b16 %v1015
  %v1122 = vunpack.c.h.b16 %v1015
  %v1123 = vunpack.c.l.b16 %v1016
  %v1124 = vunpack.c.h.b16 %v1016
  %v1125 = vunpack.c.l.b16 %v1017
  %v1126 = vunpack.c.h.b16 %v1017
  %v1127 = vunpack.c.l.b16 %v1018
  %v1128 = vunpack.c.h.b16 %v1018
  %v1129 = vunpack.c.l.b16 %v1019
  %v1130 = vunpack.c.h.b16 %v1019
  %v1131 = vunpack.c.l.b16 %v1020
  %v1132 = vunpack.c.h.b16 %v1020
  %v1133 = vunpack.c.l.b16 %v1021
  %v1134 = vunpack.c.h.b16 %v1021
  %v1135 = vunpack.c.l.b16 %v1022
  %v1136 = vunpack.c.h.b16 %v1022
  %v1137 = vunpack.c.l.b16 %v1023
  %v1138 = vunpack.c.h.b16 %v1023
  %v1139 = vunpack.c.l.b16 %v1024
  %v1140 = vunpack.c.h.b16 %v1024
  %v1141 = vunpack.c.l.b16 %v1025
  %v1142 = vunpack.c.h.b16 %v1025
  %v1143 = vunpack.c.l.b16 %v1026
  %v1144 = vunpack.c.h.b16 %v1026
  %v1145 = vunpack.c.l.b16 %v1027
  %v1146 = vunpack.c.h.b16 %v1027
  %v1147 = vunpack.c.l.b16 %v1028
  %v1148 = vunpack.c.h.b16 %v1028
  %v1149 = vunpack.c.l.b16 %v1029
  %v1150 = vunpack.c.h.b16 %v1029
  %v1151 = vunpack.c.l.b16 %v1030
  %v1152 = vunpack.c.h.b16 %v1030
  %v1153 = vunpack.c.l.b16 %v1031
  %v1154 = vunpack.c.h.b16 %v1031
  %v1155 = vunpack.c.l.b16 %v1032
  %v1156 = vunpack.c.h.b16 %v1032
  %v1157 = vunpack.c.l.b16 %v1033
  %v1158 = vunpack.c.h.b16 %v1033
  %v1159 = vunpack.c.l.b16 %v1034
  %v1160 = vunpack.c.h.b16 %v1034
  %v1161 = vunpack.c.l.b16 %v1035
  %v1162 = vunpack.c.h.b16 %v1035
  %v1163 = vunpack.c.l.b16 %v1036
  %v1164 = vunpack.c.h.b16 %v1036
  %v1165 = vunpack.c.l.b16 %v1037
  %v1166 = vunpack.c.h.b16 %v1037
  %v1167 = vunpack.c.l.b16 %v1038
  %v1168 = vunpack.c.h.b16 %v1038
  %v1169 = vunpack.c.l.b16 %v1039
  %v1170 = vunpack.c.h.b16 %v1039
  %v1171 = vunpack.c.l.b16 %v1040
  %v1172 = vunpack.c.h.b16 %v1040
  %v1173 = vunpack.c.l.b16 %v1041
  %v1174 = vunpack.c.h.b16 %v1041
  %v1175 = vunpack.c.l.b16 %v1042
  %v1176 = vunpack.c.h.b16 %v1042
  %v1177 = vunpack.c.l.b16 %v1043
  %v1178 = vunpack.c.h.b16 %v1043
  %v1179 = vunpack.c.l.b16 %v1044
  %v1180 = vunpack.c.h.b16 %v1044
  %v1181 = vpack.c.b16 %v1119, %v1117
  %v1182 = vpack.c.b16 %v1120, %v1118
  %v1183 = vpack.c.b16 %v1123, %v1121
  %v1184 = vpack.c.b16 %v1124, %v1122
  %v1185 = vpack.c.b16 %v1127, %v1125
  %v1186 = vpack.c.b16 %v1128, %v1126
  %v1187 = vpack.c.b16 %v1131, %v1129
  %v1188 = vpack.c.b16 %v1132, %v1130
  %v1189 = vpack.c.b16 %v1135, %v1133
  %v1190 = vpack.c.b16 %v1136, %v1134
  %v1191 = vpack.c.b16 %v1139, %v1137
  %v1192 = vpack.c.b16 %v1140, %v1138
  %v1193 = vpack.c.b16 %v1143, %v1141
  %v1194 = vpack.c.b16 %v1144, %v1142
  %v1195 = vpack.c.b16 %v1147, %v1145
  %v1196 = vpack.c.b16 %v1148, %v1146
  %v1197 = vpack.c.b16 %v1151, %v1149
  %v1198 = vpack.c.b16 %v1152, %v1150
  %v1199 = vpack.c.b16 %v1155, %v1153
  %v1200 = vpack.c.b16 %v1156, %v1154
  %v1201 = vpack.c.b16 %v1159, %v1157
  %v1202 = vpack.c.b16 %v1160, %v1158
  %v1203 = vpack.c.b16 %v1163, %v1161
  %v1204 = vpack.c.b16 %v1164, %v1162
  %v1205 = vpack.c.b16 %v1167, %v1165
  %v1206 = vpack.c.b16 %v1168, %v1166
  %v1207 = vpack.c.b16 %v1171, %v1169
  %v1208 = vpack.c.b16 %v1172, %v1170
  %v1209 = vpack.c.b16 %v1175, %v1173
  %v1210 = vpack.c.b16 %v1176, %v1174
  %v1211 = vpack.c.b16 %v1179, %v1177
  %v1212 = vpack.c.b16 %v1180, %v1178
  %1245 = vmatpush.bf16.msra.mxu0 %v1195
  %1246 = vmatpush.bf16.msra.mxu0 %v1193
  %1247 = vmatpush.bf16.msra.mxu0 %v1191
  %1248 = vmatpush.bf16.msra.mxu0 %v1189
  %1249 = vmatpush.bf16.msra.mxu0 %v1187
  %1250 = vmatpush.bf16.msra.mxu0 %v1185
  %1251 = vmatpush.bf16.msra.mxu0 %v1183
  %1252 = vmatpush.bf16.msra.mxu0 %v1181
  %1253 = vmatmul.bf16.gmra.mxu0 %v1069
  %v1254 = vpop.f32.mrf.mxu0
  %v1255 = vadd.f32 0.0, %v1254
  %v1256 = vpop.f32.mrf.mxu0
  %v1257 = vadd.f32 0.0, %v1256
  %1258 = vmatmul.bf16.gmra.mxu0 %v1071
  %v1259 = vpop.f32.mrf.mxu0
  %v1260 = vadd.f32 0.0, %v1259
  %v1261 = vpop.f32.mrf.mxu0
  %v1262 = vadd.f32 0.0, %v1261
  %1263 = vmatmul.bf16.gmra.mxu0 %v1073
  %v1264 = vpop.f32.mrf.mxu0
  %v1265 = vadd.f32 0.0, %v1264
  %v1266 = vpop.f32.mrf.mxu0
  %v1267 = vadd.f32 0.0, %v1266
  %1268 = vmatmul.bf16.gmra.mxu0 %v1075
  %v1269 = vpop.f32.mrf.mxu0
  %v1270 = vadd.f32 0.0, %v1269
  %v1271 = vpop.f32.mrf.mxu0
  %v1272 = vadd.f32 0.0, %v1271
  %1273 = vdwg.mxu0
  %1274 = vmatpush.bf16.msra.mxu0 %v1211
  %1275 = vmatpush.bf16.msra.mxu0 %v1209
  %1276 = vmatpush.bf16.msra.mxu0 %v1207
  %1277 = vmatpush.bf16.msra.mxu0 %v1205
  %1278 = vmatpush.bf16.msra.mxu0 %v1203
  %1279 = vmatpush.bf16.msra.mxu0 %v1201
  %1280 = vmatpush.bf16.msra.mxu0 %v1199
  %1281 = vmatpush.bf16.msra.mxu0 %v1197
  %1282 = vmatmul.bf16.gmra.mxu0 %v1070
  %v1283 = vpop.f32.mrf.mxu0
  %v1284 = vadd.f32 %v1255, %v1283
  %v1285 = vpop.f32.mrf.mxu0
  %v1286 = vadd.f32 %v1257, %v1285
  %1287 = vmatmul.bf16.gmra.mxu0 %v1072
  %v1288 = vpop.f32.mrf.mxu0
  %v1289 = vadd.f32 %v1260, %v1288
  %v1290 = vpop.f32.mrf.mxu0
  %v1291 = vadd.f32 %v1262, %v1290
  %1292 = vmatmul.bf16.gmra.mxu0 %v1074
  %v1293 = vpop.f32.mrf.mxu0
  %v1294 = vadd.f32 %v1265, %v1293
  %v1295 = vpop.f32.mrf.mxu0
  %v1296 = vadd.f32 %v1267, %v1295
  %1297 = vmatmul.bf16.gmra.mxu0 %v1076
  %v1298 = vpop.f32.mrf.mxu0
  %v1299 = vadd.f32 %v1270, %v1298
  %v1300 = vpop.f32.mrf.mxu0
  %v1301 = vadd.f32 %v1272, %v1300
  %1302 = vdwg.mxu0
  %1303 = vmatpush.bf16.msra.mxu0 %v1196
  %1304 = vmatpush.bf16.msra.mxu0 %v1194
  %1305 = vmatpush.bf16.msra.mxu0 %v1192
  %1306 = vmatpush.bf16.msra.mxu0 %v1190
  %1307 = vmatpush.bf16.msra.mxu0 %v1188
  %1308 = vmatpush.bf16.msra.mxu0 %v1186
  %1309 = vmatpush.bf16.msra.mxu0 %v1184
  %1310 = vmatpush.bf16.msra.mxu0 %v1182
  %1311 = vmatmul.bf16.gmra.mxu0 %v1069
  %v1312 = vpop.f32.mrf.mxu0
  %v1313 = vadd.f32 0.0, %v1312
  %v1314 = vpop.f32.mrf.mxu0
  %v1315 = vadd.f32 0.0, %v1314
  %1316 = vmatmul.bf16.gmra.mxu0 %v1071
  %v1317 = vpop.f32.mrf.mxu0
  %v1318 = vadd.f32 0.0, %v1317
  %v1319 = vpop.f32.mrf.mxu0
  %v1320 = vadd.f32 0.0, %v1319
  %1321 = vmatmul.bf16.gmra.mxu0 %v1073
  %v1322 = vpop.f32.mrf.mxu0
  %v1323 = vadd.f32 0.0, %v1322
  %v1324 = vpop.f32.mrf.mxu0
  %v1325 = vadd.f32 0.0, %v1324
  %1326 = vmatmul.bf16.gmra.mxu0 %v1075
  %v1327 = vpop.f32.mrf.mxu0
  %v1328 = vadd.f32 0.0, %v1327
  %v1329 = vpop.f32.mrf.mxu0
  %v1330 = vadd.f32 0.0, %v1329
  %1331 = vdwg.mxu0
  %1332 = vmatpush.bf16.msra.mxu0 %v1212
  %1333 = vmatpush.bf16.msra.mxu0 %v1210
  %1334 = vmatpush.bf16.msra.mxu0 %v1208
  %1335 = vmatpush.bf16.msra.mxu0 %v1206
  %1336 = vmatpush.bf16.msra.mxu0 %v1204
  %1337 = vmatpush.bf16.msra.mxu0 %v1202
  %1338 = vmatpush.bf16.msra.mxu0 %v1200
  %1339 = vmatpush.bf16.msra.mxu0 %v1198
  %1340 = vmatmul.bf16.gmra.mxu0 %v1070
  %v1341 = vpop.f32.mrf.mxu0
  %v1342 = vadd.f32 %v1313, %v1341
  %v1343 = vpop.f32.mrf.mxu0
  %v1344 = vadd.f32 %v1315, %v1343
  %1345 = vmatmul.bf16.gmra.mxu0 %v1072
  %v1346 = vpop.f32.mrf.mxu0
  %v1347 = vadd.f32 %v1318, %v1346
  %v1348 = vpop.f32.mrf.mxu0
  %v1349 = vadd.f32 %v1320, %v1348
  %1350 = vmatmul.bf16.gmra.mxu0 %v1074
  %v1351 = vpop.f32.mrf.mxu0
  %v1352 = vadd.f32 %v1323, %v1351
  %v1353 = vpop.f32.mrf.mxu0
  %v1354 = vadd.f32 %v1325, %v1353
  %1355 = vmatmul.bf16.gmra.mxu0 %v1076
  %v1356 = vpop.f32.mrf.mxu0
  %v1357 = vadd.f32 %v1328, %v1356
  %v1358 = vpop.f32.mrf.mxu0
  %v1359 = vadd.f32 %v1330, %v1358
  %1360 = vdwg.mxu0
  %v1361 = vadd.f32 %v927, %v1284
  %v1362 = vadd.f32 %v985, %v1342
  %v1363 = vadd.f32 %v929, %v1286
  %v1364 = vadd.f32 %v987, %v1344
  %v1365 = vadd.f32 %v932, %v1289
  %v1366 = vadd.f32 %v990, %v1347
  %v1367 = vadd.f32 %v934, %v1291
  %v1368 = vadd.f32 %v992, %v1349
  %v1369 = vadd.f32 %v937, %v1294
  %v1370 = vadd.f32 %v995, %v1352
  %v1371 = vadd.f32 %v939, %v1296
  %v1372 = vadd.f32 %v997, %v1354
  %v1373 = vadd.f32 %v942, %v1299
  %v1374 = vadd.f32 %v1000, %v1357
  %v1375 = vadd.f32 %v944, %v1301
  %v1376 = vadd.f32 %v1002, %v1359
  %v1377 = vld [vmem:[#allocation2 + $0x30] sm:$0xff]
  %v1378 = vld [vmem:[#allocation2 + $0x38] sm:$0xff]
  %v1379 = vld [vmem:[#allocation2 + $0x40] sm:$0xff]
  %v1380 = vld [vmem:[#allocation2 + $0x48] sm:$0xff]
  %v1381 = vld [vmem:[#allocation2 + $0x50] sm:$0xff]
  %v1382 = vld [vmem:[#allocation2 + $0x58] sm:$0xff]
  %v1383 = vld [vmem:[#allocation2 + $0x60] sm:$0xff]
  %v1384 = vld [vmem:[#allocation2 + $0x68] sm:$0xff]
  %s1385 = scalar_lea.vmem %s3, 768
  %v1386 = vld [vmem:[%s1385] sm:$0xff]
  %v1387 = vld [vmem:[%s1385 + $0x8] sm:$0xff]
  %v1388 = vld [vmem:[%s1385 + $0x10] sm:$0xff]
  %v1389 = vld [vmem:[%s1385 + $0x18] sm:$0xff]
  %v1390 = vld [vmem:[%s1385 + $0x20] sm:$0xff]
  %v1391 = vld [vmem:[%s1385 + $0x28] sm:$0xff]
  %v1392 = vld [vmem:[%s1385 + $0x30] sm:$0xff]
  %v1393 = vld [vmem:[%s1385 + $0x38] sm:$0xff]
  %v1394 = vld [vmem:[%s1385 + $0x40] sm:$0xff]
  %v1395 = vld [vmem:[%s1385 + $0x48] sm:$0xff]
  %v1396 = vld [vmem:[%s1385 + $0x50] sm:$0xff]
  %v1397 = vld [vmem:[%s1385 + $0x58] sm:$0xff]
  %v1398 = vld [vmem:[%s1385 + $0x60] sm:$0xff]
  %v1399 = vld [vmem:[%s1385 + $0x68] sm:$0xff]
  %v1400 = vld [vmem:[%s1385 + $0x70] sm:$0xff]
  %v1401 = vld [vmem:[%s1385 + $0x78] sm:$0xff]
  %v1402 = vld [vmem:[%s1385 + $0x80] sm:$0xff]
  %v1403 = vld [vmem:[%s1385 + $0x88] sm:$0xff]
  %v1404 = vld [vmem:[%s1385 + $0x90] sm:$0xff]
  %v1405 = vld [vmem:[%s1385 + $0x98] sm:$0xff]
  %v1406 = vld [vmem:[%s1385 + $0xa0] sm:$0xff]
  %v1407 = vld [vmem:[%s1385 + $0xa8] sm:$0xff]
  %v1408 = vld [vmem:[%s1385 + $0xb0] sm:$0xff]
  %v1409 = vld [vmem:[%s1385 + $0xb8] sm:$0xff]
  %v1410 = vld [vmem:[%s1385 + $0xc0] sm:$0xff]
  %v1411 = vld [vmem:[%s1385 + $0xc8] sm:$0xff]
  %v1412 = vld [vmem:[%s1385 + $0xd0] sm:$0xff]
  %v1413 = vld [vmem:[%s1385 + $0xd8] sm:$0xff]
  %v1414 = vld [vmem:[%s1385 + $0xe0] sm:$0xff]
  %v1415 = vld [vmem:[%s1385 + $0xe8] sm:$0xff]
  %v1416 = vld [vmem:[%s1385 + $0xf0] sm:$0xff]
  %v1417 = vld [vmem:[%s1385 + $0xf8] sm:$0xff]
  %v1426 = vunpack.c.l.b16 %v1377
  %v1427 = vunpack.c.h.b16 %v1377
  %v1428 = vunpack.c.l.b16 %v1378
  %v1429 = vunpack.c.h.b16 %v1378
  %v1430 = vunpack.c.l.b16 %v1379
  %v1431 = vunpack.c.h.b16 %v1379
  %v1432 = vunpack.c.l.b16 %v1380
  %v1433 = vunpack.c.h.b16 %v1380
  %v1434 = vunpack.c.l.b16 %v1381
  %v1435 = vunpack.c.h.b16 %v1381
  %v1436 = vunpack.c.l.b16 %v1382
  %v1437 = vunpack.c.h.b16 %v1382
  %v1438 = vunpack.c.l.b16 %v1383
  %v1439 = vunpack.c.h.b16 %v1383
  %v1440 = vunpack.c.l.b16 %v1384
  %v1441 = vunpack.c.h.b16 %v1384
  %v1442 = vpack.c.b16 %v1428, %v1426
  %v1443 = vpack.c.b16 %v1429, %v1427
  %v1444 = vpack.c.b16 %v1432, %v1430
  %v1445 = vpack.c.b16 %v1433, %v1431
  %v1446 = vpack.c.b16 %v1436, %v1434
  %v1447 = vpack.c.b16 %v1437, %v1435
  %v1448 = vpack.c.b16 %v1440, %v1438
  %v1449 = vpack.c.b16 %v1441, %v1439
  %v1490 = vunpack.c.l.b16 %v1386
  %v1491 = vunpack.c.h.b16 %v1386
  %v1492 = vunpack.c.l.b16 %v1387
  %v1493 = vunpack.c.h.b16 %v1387
  %v1494 = vunpack.c.l.b16 %v1388
  %v1495 = vunpack.c.h.b16 %v1388
  %v1496 = vunpack.c.l.b16 %v1389
  %v1497 = vunpack.c.h.b16 %v1389
  %v1498 = vunpack.c.l.b16 %v1390
  %v1499 = vunpack.c.h.b16 %v1390
  %v1500 = vunpack.c.l.b16 %v1391
  %v1501 = vunpack.c.h.b16 %v1391
  %v1502 = vunpack.c.l.b16 %v1392
  %v1503 = vunpack.c.h.b16 %v1392
  %v1504 = vunpack.c.l.b16 %v1393
  %v1505 = vunpack.c.h.b16 %v1393
  %v1506 = vunpack.c.l.b16 %v1394
  %v1507 = vunpack.c.h.b16 %v1394
  %v1508 = vunpack.c.l.b16 %v1395
  %v1509 = vunpack.c.h.b16 %v1395
  %v1510 = vunpack.c.l.b16 %v1396
  %v1511 = vunpack.c.h.b16 %v1396
  %v1512 = vunpack.c.l.b16 %v1397
  %v1513 = vunpack.c.h.b16 %v1397
  %v1514 = vunpack.c.l.b16 %v1398
  %v1515 = vunpack.c.h.b16 %v1398
  %v1516 = vunpack.c.l.b16 %v1399
  %v1517 = vunpack.c.h.b16 %v1399
  %v1518 = vunpack.c.l.b16 %v1400
  %v1519 = vunpack.c.h.b16 %v1400
  %v1520 = vunpack.c.l.b16 %v1401
  %v1521 = vunpack.c.h.b16 %v1401
  %v1522 = vunpack.c.l.b16 %v1402
  %v1523 = vunpack.c.h.b16 %v1402
  %v1524 = vunpack.c.l.b16 %v1403
  %v1525 = vunpack.c.h.b16 %v1403
  %v1526 = vunpack.c.l.b16 %v1404
  %v1527 = vunpack.c.h.b16 %v1404
  %v1528 = vunpack.c.l.b16 %v1405
  %v1529 = vunpack.c.h.b16 %v1405
  %v1530 = vunpack.c.l.b16 %v1406
  %v1531 = vunpack.c.h.b16 %v1406
  %v1532 = vunpack.c.l.b16 %v1407
  %v1533 = vunpack.c.h.b16 %v1407
  %v1534 = vunpack.c.l.b16 %v1408
  %v1535 = vunpack.c.h.b16 %v1408
  %v1536 = vunpack.c.l.b16 %v1409
  %v1537 = vunpack.c.h.b16 %v1409
  %v1538 = vunpack.c.l.b16 %v1410
  %v1539 = vunpack.c.h.b16 %v1410
  %v1540 = vunpack.c.l.b16 %v1411
  %v1541 = vunpack.c.h.b16 %v1411
  %v1542 = vunpack.c.l.b16 %v1412
  %v1543 = vunpack.c.h.b16 %v1412
  %v1544 = vunpack.c.l.b16 %v1413
  %v1545 = vunpack.c.h.b16 %v1413
  %v1546 = vunpack.c.l.b16 %v1414
  %v1547 = vunpack.c.h.b16 %v1414
  %v1548 = vunpack.c.l.b16 %v1415
  %v1549 = vunpack.c.h.b16 %v1415
  %v1550 = vunpack.c.l.b16 %v1416
  %v1551 = vunpack.c.h.b16 %v1416
  %v1552 = vunpack.c.l.b16 %v1417
  %v1553 = vunpack.c.h.b16 %v1417
  %v1554 = vpack.c.b16 %v1492, %v1490
  %v1555 = vpack.c.b16 %v1493, %v1491
  %v1556 = vpack.c.b16 %v1496, %v1494
  %v1557 = vpack.c.b16 %v1497, %v1495
  %v1558 = vpack.c.b16 %v1500, %v1498
  %v1559 = vpack.c.b16 %v1501, %v1499
  %v1560 = vpack.c.b16 %v1504, %v1502
  %v1561 = vpack.c.b16 %v1505, %v1503
  %v1562 = vpack.c.b16 %v1508, %v1506
  %v1563 = vpack.c.b16 %v1509, %v1507
  %v1564 = vpack.c.b16 %v1512, %v1510
  %v1565 = vpack.c.b16 %v1513, %v1511
  %v1566 = vpack.c.b16 %v1516, %v1514
  %v1567 = vpack.c.b16 %v1517, %v1515
  %v1568 = vpack.c.b16 %v1520, %v1518
  %v1569 = vpack.c.b16 %v1521, %v1519
  %v1570 = vpack.c.b16 %v1524, %v1522
  %v1571 = vpack.c.b16 %v1525, %v1523
  %v1572 = vpack.c.b16 %v1528, %v1526
  %v1573 = vpack.c.b16 %v1529, %v1527
  %v1574 = vpack.c.b16 %v1532, %v1530
  %v1575 = vpack.c.b16 %v1533, %v1531
  %v1576 = vpack.c.b16 %v1536, %v1534
  %v1577 = vpack.c.b16 %v1537, %v1535
  %v1578 = vpack.c.b16 %v1540, %v1538
  %v1579 = vpack.c.b16 %v1541, %v1539
  %v1580 = vpack.c.b16 %v1544, %v1542
  %v1581 = vpack.c.b16 %v1545, %v1543
  %v1582 = vpack.c.b16 %v1548, %v1546
  %v1583 = vpack.c.b16 %v1549, %v1547
  %v1584 = vpack.c.b16 %v1552, %v1550
  %v1585 = vpack.c.b16 %v1553, %v1551
  %1618 = vmatpush.bf16.msra.mxu0 %v1568
  %1619 = vmatpush.bf16.msra.mxu0 %v1566
  %1620 = vmatpush.bf16.msra.mxu0 %v1564
  %1621 = vmatpush.bf16.msra.mxu0 %v1562
  %1622 = vmatpush.bf16.msra.mxu0 %v1560
  %1623 = vmatpush.bf16.msra.mxu0 %v1558
  %1624 = vmatpush.bf16.msra.mxu0 %v1556
  %1625 = vmatpush.bf16.msra.mxu0 %v1554
  %1626 = vmatmul.bf16.gmra.mxu0 %v1442
  %v1627 = vpop.f32.mrf.mxu0
  %v1628 = vadd.f32 0.0, %v1627
  %v1629 = vpop.f32.mrf.mxu0
  %v1630 = vadd.f32 0.0, %v1629
  %1631 = vmatmul.bf16.gmra.mxu0 %v1444
  %v1632 = vpop.f32.mrf.mxu0
  %v1633 = vadd.f32 0.0, %v1632
  %v1634 = vpop.f32.mrf.mxu0
  %v1635 = vadd.f32 0.0, %v1634
  %1636 = vmatmul.bf16.gmra.mxu0 %v1446
  %v1637 = vpop.f32.mrf.mxu0
  %v1638 = vadd.f32 0.0, %v1637
  %v1639 = vpop.f32.mrf.mxu0
  %v1640 = vadd.f32 0.0, %v1639
  %1641 = vmatmul.bf16.gmra.mxu0 %v1448
  %v1642 = vpop.f32.mrf.mxu0
  %v1643 = vadd.f32 0.0, %v1642
  %v1644 = vpop.f32.mrf.mxu0
  %v1645 = vadd.f32 0.0, %v1644
  %1646 = vdwg.mxu0
  %1647 = vmatpush.bf16.msra.mxu0 %v1584
  %1648 = vmatpush.bf16.msra.mxu0 %v1582
  %1649 = vmatpush.bf16.msra.mxu0 %v1580
  %1650 = vmatpush.bf16.msra.mxu0 %v1578
  %1651 = vmatpush.bf16.msra.mxu0 %v1576
  %1652 = vmatpush.bf16.msra.mxu0 %v1574
  %1653 = vmatpush.bf16.msra.mxu0 %v1572
  %1654 = vmatpush.bf16.msra.mxu0 %v1570
  %1655 = vmatmul.bf16.gmra.mxu0 %v1443
  %v1656 = vpop.f32.mrf.mxu0
  %v1657 = vadd.f32 %v1628, %v1656
  %v1658 = vpop.f32.mrf.mxu0
  %v1659 = vadd.f32 %v1630, %v1658
  %1660 = vmatmul.bf16.gmra.mxu0 %v1445
  %v1661 = vpop.f32.mrf.mxu0
  %v1662 = vadd.f32 %v1633, %v1661
  %v1663 = vpop.f32.mrf.mxu0
  %v1664 = vadd.f32 %v1635, %v1663
  %1665 = vmatmul.bf16.gmra.mxu0 %v1447
  %v1666 = vpop.f32.mrf.mxu0
  %v1667 = vadd.f32 %v1638, %v1666
  %v1668 = vpop.f32.mrf.mxu0
  %v1669 = vadd.f32 %v1640, %v1668
  %1670 = vmatmul.bf16.gmra.mxu0 %v1449
  %v1671 = vpop.f32.mrf.mxu0
  %v1672 = vadd.f32 %v1643, %v1671
  %v1673 = vpop.f32.mrf.mxu0
  %v1674 = vadd.f32 %v1645, %v1673
  %1675 = vdwg.mxu0
  %1676 = vmatpush.bf16.msra.mxu0 %v1569
  %1677 = vmatpush.bf16.msra.mxu0 %v1567
  %1678 = vmatpush.bf16.msra.mxu0 %v1565
  %1679 = vmatpush.bf16.msra.mxu0 %v1563
  %1680 = vmatpush.bf16.msra.mxu0 %v1561
  %1681 = vmatpush.bf16.msra.mxu0 %v1559
  %1682 = vmatpush.bf16.msra.mxu0 %v1557
  %1683 = vmatpush.bf16.msra.mxu0 %v1555
  %1684 = vmatmul.bf16.gmra.mxu0 %v1442
  %v1685 = vpop.f32.mrf.mxu0
  %v1686 = vadd.f32 0.0, %v1685
  %v1687 = vpop.f32.mrf.mxu0
  %v1688 = vadd.f32 0.0, %v1687
  %1689 = vmatmul.bf16.gmra.mxu0 %v1444
  %v1690 = vpop.f32.mrf.mxu0
  %v1691 = vadd.f32 0.0, %v1690
  %v1692 = vpop.f32.mrf.mxu0
  %v1693 = vadd.f32 0.0, %v1692
  %1694 = vmatmul.bf16.gmra.mxu0 %v1446
  %v1695 = vpop.f32.mrf.mxu0
  %v1696 = vadd.f32 0.0, %v1695
  %v1697 = vpop.f32.mrf.mxu0
  %v1698 = vadd.f32 0.0, %v1697
  %1699 = vmatmul.bf16.gmra.mxu0 %v1448
  %v1700 = vpop.f32.mrf.mxu0
  %v1701 = vadd.f32 0.0, %v1700
  %v1702 = vpop.f32.mrf.mxu0
  %v1703 = vadd.f32 0.0, %v1702
  %1704 = vdwg.mxu0
  %1705 = vmatpush.bf16.msra.mxu0 %v1585
  %1706 = vmatpush.bf16.msra.mxu0 %v1583
  %1707 = vmatpush.bf16.msra.mxu0 %v1581
  %1708 = vmatpush.bf16.msra.mxu0 %v1579
  %1709 = vmatpush.bf16.msra.mxu0 %v1577
  %1710 = vmatpush.bf16.msra.mxu0 %v1575
  %1711 = vmatpush.bf16.msra.mxu0 %v1573
  %1712 = vmatpush.bf16.msra.mxu0 %v1571
  %1713 = vmatmul.bf16.gmra.mxu0 %v1443
  %v1714 = vpop.f32.mrf.mxu0
  %v1715 = vadd.f32 %v1686, %v1714
  %v1716 = vpop.f32.mrf.mxu0
  %v1717 = vadd.f32 %v1688, %v1716
  %1718 = vmatmul.bf16.gmra.mxu0 %v1445
  %v1719 = vpop.f32.mrf.mxu0
  %v1720 = vadd.f32 %v1691, %v1719
  %v1721 = vpop.f32.mrf.mxu0
  %v1722 = vadd.f32 %v1693, %v1721
  %1723 = vmatmul.bf16.gmra.mxu0 %v1447
  %v1724 = vpop.f32.mrf.mxu0
  %v1725 = vadd.f32 %v1696, %v1724
  %v1726 = vpop.f32.mrf.mxu0
  %v1727 = vadd.f32 %v1698, %v1726
  %1728 = vmatmul.bf16.gmra.mxu0 %v1449
  %v1729 = vpop.f32.mrf.mxu0
  %v1730 = vadd.f32 %v1701, %v1729
  %v1731 = vpop.f32.mrf.mxu0
  %v1732 = vadd.f32 %v1703, %v1731
  %1733 = vdwg.mxu0
  %v1734 = vadd.f32 %v1361, %v1657
  %v1735 = vadd.f32 %v1362, %v1715
  %v1736 = vadd.f32 %v1363, %v1659
  %v1737 = vadd.f32 %v1364, %v1717
  %v1738 = vadd.f32 %v1365, %v1662
  %v1739 = vadd.f32 %v1366, %v1720
  %v1740 = vadd.f32 %v1367, %v1664
  %v1741 = vadd.f32 %v1368, %v1722
  %v1742 = vadd.f32 %v1369, %v1667
  %v1743 = vadd.f32 %v1370, %v1725
  %v1744 = vadd.f32 %v1371, %v1669
  %v1745 = vadd.f32 %v1372, %v1727
  %v1746 = vadd.f32 %v1373, %v1672
  %v1747 = vadd.f32 %v1374, %v1730
  %v1748 = vadd.f32 %v1375, %v1674
  %v1749 = vadd.f32 %v1376, %v1732
  %v1750 = vld [vmem:[#allocation2 + $0x40] sm:$0xff]
  %v1751 = vld [vmem:[#allocation2 + $0x48] sm:$0xff]
  %v1752 = vld [vmem:[#allocation2 + $0x50] sm:$0xff]
  %v1753 = vld [vmem:[#allocation2 + $0x58] sm:$0xff]
  %v1754 = vld [vmem:[#allocation2 + $0x60] sm:$0xff]
  %v1755 = vld [vmem:[#allocation2 + $0x68] sm:$0xff]
  %v1756 = vld [vmem:[#allocation2 + $0x70] sm:$0xff]
  %v1757 = vld [vmem:[#allocation2 + $0x78] sm:$0xff]
  %s1758 = scalar_lea.vmem %s3, 1024
  %v1759 = vld [vmem:[%s1758] sm:$0xff]
  %v1760 = vld [vmem:[%s1758 + $0x8] sm:$0xff]
  %v1761 = vld [vmem:[%s1758 + $0x10] sm:$0xff]
  %v1762 = vld [vmem:[%s1758 + $0x18] sm:$0xff]
  %v1763 = vld [vmem:[%s1758 + $0x20] sm:$0xff]
  %v1764 = vld [vmem:[%s1758 + $0x28] sm:$0xff]
  %v1765 = vld [vmem:[%s1758 + $0x30] sm:$0xff]
  %v1766 = vld [vmem:[%s1758 + $0x38] sm:$0xff]
  %v1767 = vld [vmem:[%s1758 + $0x40] sm:$0xff]
  %v1768 = vld [vmem:[%s1758 + $0x48] sm:$0xff]
  %v1769 = vld [vmem:[%s1758 + $0x50] sm:$0xff]
  %v1770 = vld [vmem:[%s1758 + $0x58] sm:$0xff]
  %v1771 = vld [vmem:[%s1758 + $0x60] sm:$0xff]
  %v1772 = vld [vmem:[%s1758 + $0x68] sm:$0xff]
  %v1773 = vld [vmem:[%s1758 + $0x70] sm:$0xff]
  %v1774 = vld [vmem:[%s1758 + $0x78] sm:$0xff]
  %v1775 = vld [vmem:[%s1758 + $0x80] sm:$0xff]
  %v1776 = vld [vmem:[%s1758 + $0x88] sm:$0xff]
  %v1777 = vld [vmem:[%s1758 + $0x90] sm:$0xff]
  %v1778 = vld [vmem:[%s1758 + $0x98] sm:$0xff]
  %v1779 = vld [vmem:[%s1758 + $0xa0] sm:$0xff]
  %v1780 = vld [vmem:[%s1758 + $0xa8] sm:$0xff]
  %v1781 = vld [vmem:[%s1758 + $0xb0] sm:$0xff]
  %v1782 = vld [vmem:[%s1758 + $0xb8] sm:$0xff]
  %v1783 = vld [vmem:[%s1758 + $0xc0] sm:$0xff]
  %v1784 = vld [vmem:[%s1758 + $0xc8] sm:$0xff]
  %v1785 = vld [vmem:[%s1758 + $0xd0] sm:$0xff]
  %v1786 = vld [vmem:[%s1758 + $0xd8] sm:$0xff]
  %v1787 = vld [vmem:[%s1758 + $0xe0] sm:$0xff]
  %v1788 = vld [vmem:[%s1758 + $0xe8] sm:$0xff]
  %v1789 = vld [vmem:[%s1758 + $0xf0] sm:$0xff]
  %v1790 = vld [vmem:[%s1758 + $0xf8] sm:$0xff]
  %v1799 = vunpack.c.l.b16 %v1750
  %v1800 = vunpack.c.h.b16 %v1750
  %v1801 = vunpack.c.l.b16 %v1751
  %v1802 = vunpack.c.h.b16 %v1751
  %v1803 = vunpack.c.l.b16 %v1752
  %v1804 = vunpack.c.h.b16 %v1752
  %v1805 = vunpack.c.l.b16 %v1753
  %v1806 = vunpack.c.h.b16 %v1753
  %v1807 = vunpack.c.l.b16 %v1754
  %v1808 = vunpack.c.h.b16 %v1754
  %v1809 = vunpack.c.l.b16 %v1755
  %v1810 = vunpack.c.h.b16 %v1755
  %v1811 = vunpack.c.l.b16 %v1756
  %v1812 = vunpack.c.h.b16 %v1756
  %v1813 = vunpack.c.l.b16 %v1757
  %v1814 = vunpack.c.h.b16 %v1757
  %v1815 = vpack.c.b16 %v1801, %v1799
  %v1816 = vpack.c.b16 %v1802, %v1800
  %v1817 = vpack.c.b16 %v1805, %v1803
  %v1818 = vpack.c.b16 %v1806, %v1804
  %v1819 = vpack.c.b16 %v1809, %v1807
  %v1820 = vpack.c.b16 %v1810, %v1808
  %v1821 = vpack.c.b16 %v1813, %v1811
  %v1822 = vpack.c.b16 %v1814, %v1812
  %v1863 = vunpack.c.l.b16 %v1759
  %v1864 = vunpack.c.h.b16 %v1759
  %v1865 = vunpack.c.l.b16 %v1760
  %v1866 = vunpack.c.h.b16 %v1760
  %v1867 = vunpack.c.l.b16 %v1761
  %v1868 = vunpack.c.h.b16 %v1761
  %v1869 = vunpack.c.l.b16 %v1762
  %v1870 = vunpack.c.h.b16 %v1762
  %v1871 = vunpack.c.l.b16 %v1763
  %v1872 = vunpack.c.h.b16 %v1763
  %v1873 = vunpack.c.l.b16 %v1764
  %v1874 = vunpack.c.h.b16 %v1764
  %v1875 = vunpack.c.l.b16 %v1765
  %v1876 = vunpack.c.h.b16 %v1765
  %v1877 = vunpack.c.l.b16 %v1766
  %v1878 = vunpack.c.h.b16 %v1766
  %v1879 = vunpack.c.l.b16 %v1767
  %v1880 = vunpack.c.h.b16 %v1767
  %v1881 = vunpack.c.l.b16 %v1768
  %v1882 = vunpack.c.h.b16 %v1768
  %v1883 = vunpack.c.l.b16 %v1769
  %v1884 = vunpack.c.h.b16 %v1769
  %v1885 = vunpack.c.l.b16 %v1770
  %v1886 = vunpack.c.h.b16 %v1770
  %v1887 = vunpack.c.l.b16 %v1771
  %v1888 = vunpack.c.h.b16 %v1771
  %v1889 = vunpack.c.l.b16 %v1772
  %v1890 = vunpack.c.h.b16 %v1772
  %v1891 = vunpack.c.l.b16 %v1773
  %v1892 = vunpack.c.h.b16 %v1773
  %v1893 = vunpack.c.l.b16 %v1774
  %v1894 = vunpack.c.h.b16 %v1774
  %v1895 = vunpack.c.l.b16 %v1775
  %v1896 = vunpack.c.h.b16 %v1775
  %v1897 = vunpack.c.l.b16 %v1776
  %v1898 = vunpack.c.h.b16 %v1776
  %v1899 = vunpack.c.l.b16 %v1777
  %v1900 = vunpack.c.h.b16 %v1777
  %v1901 = vunpack.c.l.b16 %v1778
  %v1902 = vunpack.c.h.b16 %v1778
  %v1903 = vunpack.c.l.b16 %v1779
  %v1904 = vunpack.c.h.b16 %v1779
  %v1905 = vunpack.c.l.b16 %v1780
  %v1906 = vunpack.c.h.b16 %v1780
  %v1907 = vunpack.c.l.b16 %v1781
  %v1908 = vunpack.c.h.b16 %v1781
  %v1909 = vunpack.c.l.b16 %v1782
  %v1910 = vunpack.c.h.b16 %v1782
  %v1911 = vunpack.c.l.b16 %v1783
  %v1912 = vunpack.c.h.b16 %v1783
  %v1913 = vunpack.c.l.b16 %v1784
  %v1914 = vunpack.c.h.b16 %v1784
  %v1915 = vunpack.c.l.b16 %v1785
  %v1916 = vunpack.c.h.b16 %v1785
  %v1917 = vunpack.c.l.b16 %v1786
  %v1918 = vunpack.c.h.b16 %v1786
  %v1919 = vunpack.c.l.b16 %v1787
  %v1920 = vunpack.c.h.b16 %v1787
  %v1921 = vunpack.c.l.b16 %v1788
  %v1922 = vunpack.c.h.b16 %v1788
  %v1923 = vunpack.c.l.b16 %v1789
  %v1924 = vunpack.c.h.b16 %v1789
  %v1925 = vunpack.c.l.b16 %v1790
  %v1926 = vunpack.c.h.b16 %v1790
  %v1927 = vpack.c.b16 %v1865, %v1863
  %v1928 = vpack.c.b16 %v1866, %v1864
  %v1929 = vpack.c.b16 %v1869, %v1867
  %v1930 = vpack.c.b16 %v1870, %v1868
  %v1931 = vpack.c.b16 %v1873, %v1871
  %v1932 = vpack.c.b16 %v1874, %v1872
  %v1933 = vpack.c.b16 %v1877, %v1875
  %v1934 = vpack.c.b16 %v1878, %v1876
  %v1935 = vpack.c.b16 %v1881, %v1879
  %v1936 = vpack.c.b16 %v1882, %v1880
  %v1937 = vpack.c.b16 %v1885, %v1883
  %v1938 = vpack.c.b16 %v1886, %v1884
  %v1939 = vpack.c.b16 %v1889, %v1887
  %v1940 = vpack.c.b16 %v1890, %v1888
  %v1941 = vpack.c.b16 %v1893, %v1891
  %v1942 = vpack.c.b16 %v1894, %v1892
  %v1943 = vpack.c.b16 %v1897, %v1895
  %v1944 = vpack.c.b16 %v1898, %v1896
  %v1945 = vpack.c.b16 %v1901, %v1899
  %v1946 = vpack.c.b16 %v1902, %v1900
  %v1947 = vpack.c.b16 %v1905, %v1903
  %v1948 = vpack.c.b16 %v1906, %v1904
  %v1949 = vpack.c.b16 %v1909, %v1907
  %v1950 = vpack.c.b16 %v1910, %v1908
  %v1951 = vpack.c.b16 %v1913, %v1911
  %v1952 = vpack.c.b16 %v1914, %v1912
  %v1953 = vpack.c.b16 %v1917, %v1915
  %v1954 = vpack.c.b16 %v1918, %v1916
  %v1955 = vpack.c.b16 %v1921, %v1919
  %v1956 = vpack.c.b16 %v1922, %v1920
  %v1957 = vpack.c.b16 %v1925, %v1923
  %v1958 = vpack.c.b16 %v1926, %v1924
  %1991 = vmatpush.bf16.msra.mxu0 %v1941
  %1992 = vmatpush.bf16.msra.mxu0 %v1939
  %1993 = vmatpush.bf16.msra.mxu0 %v1937
  %1994 = vmatpush.bf16.msra.mxu0 %v1935
  %1995 = vmatpush.bf16.msra.mxu0 %v1933
  %1996 = vmatpush.bf16.msra.mxu0 %v1931
  %1997 = vmatpush.bf16.msra.mxu0 %v1929
  %1998 = vmatpush.bf16.msra.mxu0 %v1927
  %1999 = vmatmul.bf16.gmra.mxu0 %v1815
  %v2000 = vpop.f32.mrf.mxu0
  %v2001 = vadd.f32 0.0, %v2000
  %v2002 = vpop.f32.mrf.mxu0
  %v2003 = vadd.f32 0.0, %v2002
  %2004 = vmatmul.bf16.gmra.mxu0 %v1817
  %v2005 = vpop.f32.mrf.mxu0
  %v2006 = vadd.f32 0.0, %v2005
  %v2007 = vpop.f32.mrf.mxu0
  %v2008 = vadd.f32 0.0, %v2007
  %2009 = vmatmul.bf16.gmra.mxu0 %v1819
  %v2010 = vpop.f32.mrf.mxu0
  %v2011 = vadd.f32 0.0, %v2010
  %v2012 = vpop.f32.mrf.mxu0
  %v2013 = vadd.f32 0.0, %v2012
  %2014 = vmatmul.bf16.gmra.mxu0 %v1821
  %v2015 = vpop.f32.mrf.mxu0
  %v2016 = vadd.f32 0.0, %v2015
  %v2017 = vpop.f32.mrf.mxu0
  %v2018 = vadd.f32 0.0, %v2017
  %2019 = vdwg.mxu0
  %2020 = vmatpush.bf16.msra.mxu0 %v1957
  %2021 = vmatpush.bf16.msra.mxu0 %v1955
  %2022 = vmatpush.bf16.msra.mxu0 %v1953
  %2023 = vmatpush.bf16.msra.mxu0 %v1951
  %2024 = vmatpush.bf16.msra.mxu0 %v1949
  %2025 = vmatpush.bf16.msra.mxu0 %v1947
  %2026 = vmatpush.bf16.msra.mxu0 %v1945
  %2027 = vmatpush.bf16.msra.mxu0 %v1943
  %2028 = vmatmul.bf16.gmra.mxu0 %v1816
  %v2029 = vpop.f32.mrf.mxu0
  %v2030 = vadd.f32 %v2001, %v2029
  %v2031 = vpop.f32.mrf.mxu0
  %v2032 = vadd.f32 %v2003, %v2031
  %2033 = vmatmul.bf16.gmra.mxu0 %v1818
  %v2034 = vpop.f32.mrf.mxu0
  %v2035 = vadd.f32 %v2006, %v2034
  %v2036 = vpop.f32.mrf.mxu0
  %v2037 = vadd.f32 %v2008, %v2036
  %2038 = vmatmul.bf16.gmra.mxu0 %v1820
  %v2039 = vpop.f32.mrf.mxu0
  %v2040 = vadd.f32 %v2011, %v2039
  %v2041 = vpop.f32.mrf.mxu0
  %v2042 = vadd.f32 %v2013, %v2041
  %2043 = vmatmul.bf16.gmra.mxu0 %v1822
  %v2044 = vpop.f32.mrf.mxu0
  %v2045 = vadd.f32 %v2016, %v2044
  %v2046 = vpop.f32.mrf.mxu0
  %v2047 = vadd.f32 %v2018, %v2046
  %2048 = vdwg.mxu0
  %2049 = vmatpush.bf16.msra.mxu0 %v1942
  %2050 = vmatpush.bf16.msra.mxu0 %v1940
  %2051 = vmatpush.bf16.msra.mxu0 %v1938
  %2052 = vmatpush.bf16.msra.mxu0 %v1936
  %2053 = vmatpush.bf16.msra.mxu0 %v1934
  %2054 = vmatpush.bf16.msra.mxu0 %v1932
  %2055 = vmatpush.bf16.msra.mxu0 %v1930
  %2056 = vmatpush.bf16.msra.mxu0 %v1928
  %2057 = vmatmul.bf16.gmra.mxu0 %v1815
  %v2058 = vpop.f32.mrf.mxu0
  %v2059 = vadd.f32 0.0, %v2058
  %v2060 = vpop.f32.mrf.mxu0
  %v2061 = vadd.f32 0.0, %v2060
  %2062 = vmatmul.bf16.gmra.mxu0 %v1817
  %v2063 = vpop.f32.mrf.mxu0
  %v2064 = vadd.f32 0.0, %v2063
  %v2065 = vpop.f32.mrf.mxu0
  %v2066 = vadd.f32 0.0, %v2065
  %2067 = vmatmul.bf16.gmra.mxu0 %v1819
  %v2068 = vpop.f32.mrf.mxu0
  %v2069 = vadd.f32 0.0, %v2068
  %v2070 = vpop.f32.mrf.mxu0
  %v2071 = vadd.f32 0.0, %v2070
  %2072 = vmatmul.bf16.gmra.mxu0 %v1821
  %v2073 = vpop.f32.mrf.mxu0
  %v2074 = vadd.f32 0.0, %v2073
  %v2075 = vpop.f32.mrf.mxu0
  %v2076 = vadd.f32 0.0, %v2075
  %2077 = vdwg.mxu0
  %2078 = vmatpush.bf16.msra.mxu0 %v1958
  %2079 = vmatpush.bf16.msra.mxu0 %v1956
  %2080 = vmatpush.bf16.msra.mxu0 %v1954
  %2081 = vmatpush.bf16.msra.mxu0 %v1952
  %2082 = vmatpush.bf16.msra.mxu0 %v1950
  %2083 = vmatpush.bf16.msra.mxu0 %v1948
  %2084 = vmatpush.bf16.msra.mxu0 %v1946
  %2085 = vmatpush.bf16.msra.mxu0 %v1944
  %2086 = vmatmul.bf16.gmra.mxu0 %v1816
  %v2087 = vpop.f32.mrf.mxu0
  %v2088 = vadd.f32 %v2059, %v2087
  %v2089 = vpop.f32.mrf.mxu0
  %v2090 = vadd.f32 %v2061, %v2089
  %2091 = vmatmul.bf16.gmra.mxu0 %v1818
  %v2092 = vpop.f32.mrf.mxu0
  %v2093 = vadd.f32 %v2064, %v2092
  %v2094 = vpop.f32.mrf.mxu0
  %v2095 = vadd.f32 %v2066, %v2094
  %2096 = vmatmul.bf16.gmra.mxu0 %v1820
  %v2097 = vpop.f32.mrf.mxu0
  %v2098 = vadd.f32 %v2069, %v2097
  %v2099 = vpop.f32.mrf.mxu0
  %v2100 = vadd.f32 %v2071, %v2099
  %2101 = vmatmul.bf16.gmra.mxu0 %v1822
  %v2102 = vpop.f32.mrf.mxu0
  %v2103 = vadd.f32 %v2074, %v2102
  %v2104 = vpop.f32.mrf.mxu0
  %v2105 = vadd.f32 %v2076, %v2104
  %2106 = vdwg.mxu0
  %v2107 = vadd.f32 %v1734, %v2030
  %v2108 = vadd.f32 %v1735, %v2088
  %v2109 = vadd.f32 %v1736, %v2032
  %v2110 = vadd.f32 %v1737, %v2090
  %v2111 = vadd.f32 %v1738, %v2035
  %v2112 = vadd.f32 %v1739, %v2093
  %v2113 = vadd.f32 %v1740, %v2037
  %v2114 = vadd.f32 %v1741, %v2095
  %v2115 = vadd.f32 %v1742, %v2040
  %v2116 = vadd.f32 %v1743, %v2098
  %v2117 = vadd.f32 %v1744, %v2042
  %v2118 = vadd.f32 %v1745, %v2100
  %v2119 = vadd.f32 %v1746, %v2045
  %v2120 = vadd.f32 %v1747, %v2103
  %v2121 = vadd.f32 %v1748, %v2047
  %v2122 = vadd.f32 %v1749, %v2105
  %v2123 = vld [vmem:[%s4] sm:$0x3]
  %v2125 = vperm.slane %v2123, 0
  %v2126 = vperm.slane %v2123, 1
  %v2129 = vadd.f32 %v2107, %v2125
  %v2130 = vadd.f32 %v2108, %v2126
  %v2131 = vadd.f32 %v2109, %v2125
  %v2132 = vadd.f32 %v2110, %v2126
  %v2133 = vadd.f32 %v2111, %v2125
  %v2134 = vadd.f32 %v2112, %v2126
  %v2135 = vadd.f32 %v2113, %v2125
  %v2136 = vadd.f32 %v2114, %v2126
  %v2137 = vadd.f32 %v2115, %v2125
  %v2138 = vadd.f32 %v2116, %v2126
  %v2139 = vadd.f32 %v2117, %v2125
  %v2140 = vadd.f32 %v2118, %v2126
  %v2141 = vadd.f32 %v2119, %v2125
  %v2142 = vadd.f32 %v2120, %v2126
  %v2143 = vadd.f32 %v2121, %v2125
  %v2144 = vadd.f32 %v2122, %v2126
  %v2145 = vmax.f32 %v2129, 0.0
  %v2146 = vmax.f32 %v2130, 0.0
  %v2147 = vmax.f32 %v2131, 0.0
  %v2148 = vmax.f32 %v2132, 0.0
  %v2149 = vmax.f32 %v2133, 0.0
  %v2150 = vmax.f32 %v2134, 0.0
  %v2151 = vmax.f32 %v2135, 0.0
  %v2152 = vmax.f32 %v2136, 0.0
  %v2153 = vmax.f32 %v2137, 0.0
  %v2154 = vmax.f32 %v2138, 0.0
  %v2155 = vmax.f32 %v2139, 0.0
  %v2156 = vmax.f32 %v2140, 0.0
  %v2157 = vmax.f32 %v2141, 0.0
  %v2158 = vmax.f32 %v2142, 0.0
  %v2159 = vmax.f32 %v2143, 0.0
  %v2160 = vmax.f32 %v2144, 0.0
  %v2161 = vpack.c.bf16 %v2146, %v2145
  %v2162 = vpack.c.bf16 %v2148, %v2147
  %v2163 = vpack.c.bf16 %v2150, %v2149
  %v2164 = vpack.c.bf16 %v2152, %v2151
  %v2165 = vpack.c.bf16 %v2154, %v2153
  %v2166 = vpack.c.bf16 %v2156, %v2155
  %v2167 = vpack.c.bf16 %v2158, %v2157
  %v2168 = vpack.c.bf16 %v2160, %v2159
  %2169 = vst [vmem:[#allocation3] sm:$0xff] %v2161
  %2170 = vst [vmem:[#allocation3 + $0x8] sm:$0xff] %v2162
  %2171 = vst [vmem:[#allocation3 + $0x10] sm:$0xff] %v2163
  %2172 = vst [vmem:[#allocation3 + $0x18] sm:$0xff] %v2164
  %2173 = vst [vmem:[#allocation3 + $0x20] sm:$0xff] %v2165
  %2174 = vst [vmem:[#allocation3 + $0x28] sm:$0xff] %v2166
  %2175 = vst [vmem:[#allocation3 + $0x30] sm:$0xff] %v2167
  %2176 = vst [vmem:[#allocation3 + $0x38] sm:$0xff] %v2168
  %v2177 = vld [vmem:[#allocation3] sm:$0xff]
  %v2178 = vld [vmem:[#allocation3 + $0x8] sm:$0xff]
  %v2179 = vld [vmem:[%s5] sm:$0xf]
  %v2180 = vld [vmem:[%s5 + $0x4] sm:$0xf]
  %v2181 = vld [vmem:[%s5 + $0x8] sm:$0xf]
  %v2182 = vld [vmem:[%s5 + $0xc] sm:$0xf]
  %v2183 = vld [vmem:[%s5 + $0x10] sm:$0xf]
  %v2184 = vld [vmem:[%s5 + $0x14] sm:$0xf]
  %v2185 = vld [vmem:[%s5 + $0x18] sm:$0xf]
  %v2186 = vld [vmem:[%s5 + $0x1c] sm:$0xf]
  %v2187 = vld [vmem:[%s5 + $0x20] sm:$0xf]
  %v2188 = vld [vmem:[%s5 + $0x24] sm:$0xf]
  %v2189 = vld [vmem:[%s5 + $0x28] sm:$0xf]
  %v2190 = vld [vmem:[%s5 + $0x2c] sm:$0xf]
  %v2191 = vld [vmem:[%s5 + $0x30] sm:$0xf]
  %v2192 = vld [vmem:[%s5 + $0x34] sm:$0xf]
  %v2193 = vld [vmem:[%s5 + $0x38] sm:$0xf]
  %v2194 = vld [vmem:[%s5 + $0x3c] sm:$0xf]
  %v2195 = vld [vmem:[%s5 + $0x40] sm:$0xf]
  %v2196 = vld [vmem:[%s5 + $0x44] sm:$0xf]
  %v2197 = vld [vmem:[%s5 + $0x48] sm:$0xf]
  %v2198 = vld [vmem:[%s5 + $0x4c] sm:$0xf]
  %v2199 = vld [vmem:[%s5 + $0x50] sm:$0xf]
  %v2200 = vld [vmem:[%s5 + $0x54] sm:$0xf]
  %v2201 = vld [vmem:[%s5 + $0x58] sm:$0xf]
  %v2202 = vld [vmem:[%s5 + $0x5c] sm:$0xf]
  %v2203 = vld [vmem:[%s5 + $0x60] sm:$0xf]
  %v2204 = vld [vmem:[%s5 + $0x64] sm:$0xf]
  %v2205 = vld [vmem:[%s5 + $0x68] sm:$0xf]
  %v2206 = vld [vmem:[%s5 + $0x6c] sm:$0xf]
  %v2207 = vld [vmem:[%s5 + $0x70] sm:$0xf]
  %v2208 = vld [vmem:[%s5 + $0x74] sm:$0xf]
  %v2209 = vld [vmem:[%s5 + $0x78] sm:$0xf]
  %v2210 = vld [vmem:[%s5 + $0x7c] sm:$0xf]
  %v2211 = vld [vmem:[#allocation3 + $0x10] sm:$0xff]
  %v2212 = vld [vmem:[#allocation3 + $0x18] sm:$0xff]
  %s2213 = scalar_lea.vmem %s5, 128
  %v2214 = vld [vmem:[%s2213] sm:$0xf]
  %v2215 = vld [vmem:[%s2213 + $0x4] sm:$0xf]
  %v2216 = vld [vmem:[%s2213 + $0x8] sm:$0xf]
  %v2217 = vld [vmem:[%s2213 + $0xc] sm:$0xf]
  %v2218 = vld [vmem:[%s2213 + $0x10] sm:$0xf]
  %v2219 = vld [vmem:[%s2213 + $0x14] sm:$0xf]
  %v2220 = vld [vmem:[%s2213 + $0x18] sm:$0xf]
  %v2221 = vld [vmem:[%s2213 + $0x1c] sm:$0xf]
  %v2222 = vld [vmem:[%s2213 + $0x20] sm:$0xf]
  %v2223 = vld [vmem:[%s2213 + $0x24] sm:$0xf]
  %v2224 = vld [vmem:[%s2213 + $0x28] sm:$0xf]
  %v2225 = vld [vmem:[%s2213 + $0x2c] sm:$0xf]
  %v2226 = vld [vmem:[%s2213 + $0x30] sm:$0xf]
  %v2227 = vld [vmem:[%s2213 + $0x34] sm:$0xf]
  %v2228 = vld [vmem:[%s2213 + $0x38] sm:$0xf]
  %v2229 = vld [vmem:[%s2213 + $0x3c] sm:$0xf]
  %v2230 = vld [vmem:[%s2213 + $0x40] sm:$0xf]
  %v2231 = vld [vmem:[%s2213 + $0x44] sm:$0xf]
  %v2232 = vld [vmem:[%s2213 + $0x48] sm:$0xf]
  %v2233 = vld [vmem:[%s2213 + $0x4c] sm:$0xf]
  %v2234 = vld [vmem:[%s2213 + $0x50] sm:$0xf]
  %v2235 = vld [vmem:[%s2213 + $0x54] sm:$0xf]
  %v2236 = vld [vmem:[%s2213 + $0x58] sm:$0xf]
  %v2237 = vld [vmem:[%s2213 + $0x5c] sm:$0xf]
  %v2238 = vld [vmem:[%s2213 + $0x60] sm:$0xf]
  %v2239 = vld [vmem:[%s2213 + $0x64] sm:$0xf]
  %v2240 = vld [vmem:[%s2213 + $0x68] sm:$0xf]
  %v2241 = vld [vmem:[%s2213 + $0x6c] sm:$0xf]
  %v2242 = vld [vmem:[%s2213 + $0x70] sm:$0xf]
  %v2243 = vld [vmem:[%s2213 + $0x74] sm:$0xf]
  %v2244 = vld [vmem:[%s2213 + $0x78] sm:$0xf]
  %v2245 = vld [vmem:[%s2213 + $0x7c] sm:$0xf]
  %v2248 = vunpack.c.l.b16 %v2211
  %v2249 = vunpack.c.h.b16 %v2211
  %v2250 = vunpack.c.l.b16 %v2212
  %v2251 = vunpack.c.h.b16 %v2212
  %v2252 = vpack.c.b16 %v2250, %v2248
  %v2253 = vpack.c.b16 %v2251, %v2249
  %v2288 = vunpack.c.l.b16 %v2214
  %v2289 = vunpack.c.l.b16 %v2215
  %v2290 = vunpack.c.l.b16 %v2216
  %v2291 = vunpack.c.l.b16 %v2217
  %v2292 = vunpack.c.l.b16 %v2218
  %v2293 = vunpack.c.l.b16 %v2219
  %v2294 = vunpack.c.l.b16 %v2220
  %v2295 = vunpack.c.l.b16 %v2221
  %v2296 = vunpack.c.l.b16 %v2222
  %v2297 = vunpack.c.l.b16 %v2223
  %v2298 = vunpack.c.l.b16 %v2224
  %v2299 = vunpack.c.l.b16 %v2225
  %v2300 = vunpack.c.l.b16 %v2226
  %v2301 = vunpack.c.l.b16 %v2227
  %v2302 = vunpack.c.l.b16 %v2228
  %v2303 = vunpack.c.l.b16 %v2229
  %v2304 = vunpack.c.l.b16 %v2230
  %v2305 = vunpack.c.l.b16 %v2231
  %v2306 = vunpack.c.l.b16 %v2232
  %v2307 = vunpack.c.l.b16 %v2233
  %v2308 = vunpack.c.l.b16 %v2234
  %v2309 = vunpack.c.l.b16 %v2235
  %v2310 = vunpack.c.l.b16 %v2236
  %v2311 = vunpack.c.l.b16 %v2237
  %v2312 = vunpack.c.l.b16 %v2238
  %v2313 = vunpack.c.l.b16 %v2239
  %v2314 = vunpack.c.l.b16 %v2240
  %v2315 = vunpack.c.l.b16 %v2241
  %v2316 = vunpack.c.l.b16 %v2242
  %v2317 = vunpack.c.l.b16 %v2243
  %v2318 = vunpack.c.l.b16 %v2244
  %v2319 = vunpack.c.l.b16 %v2245
  %v2320 = vpack.c.b16 %v2289, %v2288
  %v2321 = vpack.c.b16 %v2291, %v2290
  %v2322 = vpack.c.b16 %v2293, %v2292
  %v2323 = vpack.c.b16 %v2295, %v2294
  %v2324 = vpack.c.b16 %v2297, %v2296
  %v2325 = vpack.c.b16 %v2299, %v2298
  %v2326 = vpack.c.b16 %v2301, %v2300
  %v2327 = vpack.c.b16 %v2303, %v2302
  %v2328 = vpack.c.b16 %v2305, %v2304
  %v2329 = vpack.c.b16 %v2307, %v2306
  %v2330 = vpack.c.b16 %v2309, %v2308
  %v2331 = vpack.c.b16 %v2311, %v2310
  %v2332 = vpack.c.b16 %v2313, %v2312
  %v2333 = vpack.c.b16 %v2315, %v2314
  %v2334 = vpack.c.b16 %v2317, %v2316
  %v2335 = vpack.c.b16 %v2319, %v2318
  %2352 = vmatpush.bf16.msra.mxu0 %v2327
  %2353 = vmatpush.bf16.msra.mxu0 %v2326
  %2354 = vmatpush.bf16.msra.mxu0 %v2325
  %2355 = vmatpush.bf16.msra.mxu0 %v2324
  %2356 = vmatpush.bf16.msra.mxu0 %v2323
  %2357 = vmatpush.bf16.msra.mxu0 %v2322
  %2358 = vmatpush.bf16.msra.mxu0 %v2321
  %2359 = vmatpush.bf16.msra.mxu0 %v2320
  %2360 = vmatmul.bf16.gmra.mxu0 %v2252
  %v2361 = vpop.f32.mrf.mxu0
  %v2362 = vadd.f32 0.0, %v2361
  %v2363 = vpop.f32.mrf.mxu0
  %v2364 = vadd.f32 0.0, %v2363
  %2365 = vdwg.mxu0
  %2366 = vmatpush.bf16.msra.mxu0 %v2335
  %2367 = vmatpush.bf16.msra.mxu0 %v2334
  %2368 = vmatpush.bf16.msra.mxu0 %v2333
  %2369 = vmatpush.bf16.msra.mxu0 %v2332
  %2370 = vmatpush.bf16.msra.mxu0 %v2331
  %2371 = vmatpush.bf16.msra.mxu0 %v2330
  %2372 = vmatpush.bf16.msra.mxu0 %v2329
  %2373 = vmatpush.bf16.msra.mxu0 %v2328
  %2374 = vmatmul.bf16.gmra.mxu0 %v2253
  %v2375 = vpop.f32.mrf.mxu0
  %v2376 = vadd.f32 %v2362, %v2375
  %v2377 = vpop.f32.mrf.mxu0
  %v2378 = vadd.f32 %v2364, %v2377
  %2379 = vdwg.mxu0
  %v2382 = vunpack.c.l.b16 %v2177
  %v2383 = vunpack.c.h.b16 %v2177
  %v2384 = vunpack.c.l.b16 %v2178
  %v2385 = vunpack.c.h.b16 %v2178
  %v2386 = vpack.c.b16 %v2384, %v2382
  %v2387 = vpack.c.b16 %v2385, %v2383
  %v2422 = vunpack.c.l.b16 %v2179
  %v2423 = vunpack.c.l.b16 %v2180
  %v2424 = vunpack.c.l.b16 %v2181
  %v2425 = vunpack.c.l.b16 %v2182
  %v2426 = vunpack.c.l.b16 %v2183
  %v2427 = vunpack.c.l.b16 %v2184
  %v2428 = vunpack.c.l.b16 %v2185
  %v2429 = vunpack.c.l.b16 %v2186
  %v2430 = vunpack.c.l.b16 %v2187
  %v2431 = vunpack.c.l.b16 %v2188
  %v2432 = vunpack.c.l.b16 %v2189
  %v2433 = vunpack.c.l.b16 %v2190
  %v2434 = vunpack.c.l.b16 %v2191
  %v2435 = vunpack.c.l.b16 %v2192
  %v2436 = vunpack.c.l.b16 %v2193
  %v2437 = vunpack.c.l.b16 %v2194
  %v2438 = vunpack.c.l.b16 %v2195
  %v2439 = vunpack.c.l.b16 %v2196
  %v2440 = vunpack.c.l.b16 %v2197
  %v2441 = vunpack.c.l.b16 %v2198
  %v2442 = vunpack.c.l.b16 %v2199
  %v2443 = vunpack.c.l.b16 %v2200
  %v2444 = vunpack.c.l.b16 %v2201
  %v2445 = vunpack.c.l.b16 %v2202
  %v2446 = vunpack.c.l.b16 %v2203
  %v2447 = vunpack.c.l.b16 %v2204
  %v2448 = vunpack.c.l.b16 %v2205
  %v2449 = vunpack.c.l.b16 %v2206
  %v2450 = vunpack.c.l.b16 %v2207
  %v2451 = vunpack.c.l.b16 %v2208
  %v2452 = vunpack.c.l.b16 %v2209
  %v2453 = vunpack.c.l.b16 %v2210
  %v2454 = vpack.c.b16 %v2423, %v2422
  %v2455 = vpack.c.b16 %v2425, %v2424
  %v2456 = vpack.c.b16 %v2427, %v2426
  %v2457 = vpack.c.b16 %v2429, %v2428
  %v2458 = vpack.c.b16 %v2431, %v2430
  %v2459 = vpack.c.b16 %v2433, %v2432
  %v2460 = vpack.c.b16 %v2435, %v2434
  %v2461 = vpack.c.b16 %v2437, %v2436
  %v2462 = vpack.c.b16 %v2439, %v2438
  %v2463 = vpack.c.b16 %v2441, %v2440
  %v2464 = vpack.c.b16 %v2443, %v2442
  %v2465 = vpack.c.b16 %v2445, %v2444
  %v2466 = vpack.c.b16 %v2447, %v2446
  %v2467 = vpack.c.b16 %v2449, %v2448
  %v2468 = vpack.c.b16 %v2451, %v2450
  %v2469 = vpack.c.b16 %v2453, %v2452
  %2486 = vmatpush.bf16.msra.mxu0 %v2461
  %2487 = vmatpush.bf16.msra.mxu0 %v2460
  %2488 = vmatpush.bf16.msra.mxu0 %v2459
  %2489 = vmatpush.bf16.msra.mxu0 %v2458
  %2490 = vmatpush.bf16.msra.mxu0 %v2457
  %2491 = vmatpush.bf16.msra.mxu0 %v2456
  %2492 = vmatpush.bf16.msra.mxu0 %v2455
  %2493 = vmatpush.bf16.msra.mxu0 %v2454
  %2494 = vmatmul.bf16.gmra.mxu0 %v2386
  %v2495 = vpop.f32.mrf.mxu0
  %v2496 = vadd.f32 %v2376, %v2495
  %v2497 = vpop.f32.mrf.mxu0
  %v2498 = vadd.f32 %v2378, %v2497
  %2499 = vdwg.mxu0
  %2500 = vmatpush.bf16.msra.mxu0 %v2469
  %2501 = vmatpush.bf16.msra.mxu0 %v2468
  %2502 = vmatpush.bf16.msra.mxu0 %v2467
  %2503 = vmatpush.bf16.msra.mxu0 %v2466
  %2504 = vmatpush.bf16.msra.mxu0 %v2465
  %2505 = vmatpush.bf16.msra.mxu0 %v2464
  %2506 = vmatpush.bf16.msra.mxu0 %v2463
  %2507 = vmatpush.bf16.msra.mxu0 %v2462
  %2508 = vmatmul.bf16.gmra.mxu0 %v2387
  %v2509 = vpop.f32.mrf.mxu0
  %v2510 = vadd.f32 %v2496, %v2509
  %v2511 = vpop.f32.mrf.mxu0
  %v2512 = vadd.f32 %v2498, %v2511
  %2513 = vdwg.mxu0
  %v2514 = vld [vmem:[#allocation3 + $0x20] sm:$0xff]
  %v2515 = vld [vmem:[#allocation3 + $0x28] sm:$0xff]
  %s2516 = scalar_lea.vmem %s5, 256
  %v2517 = vld [vmem:[%s2516] sm:$0xf]
  %v2518 = vld [vmem:[%s2516 + $0x4] sm:$0xf]
  %v2519 = vld [vmem:[%s2516 + $0x8] sm:$0xf]
  %v2520 = vld [vmem:[%s2516 + $0xc] sm:$0xf]
  %v2521 = vld [vmem:[%s2516 + $0x10] sm:$0xf]
  %v2522 = vld [vmem:[%s2516 + $0x14] sm:$0xf]
  %v2523 = vld [vmem:[%s2516 + $0x18] sm:$0xf]
  %v2524 = vld [vmem:[%s2516 + $0x1c] sm:$0xf]
  %v2525 = vld [vmem:[%s2516 + $0x20] sm:$0xf]
  %v2526 = vld [vmem:[%s2516 + $0x24] sm:$0xf]
  %v2527 = vld [vmem:[%s2516 + $0x28] sm:$0xf]
  %v2528 = vld [vmem:[%s2516 + $0x2c] sm:$0xf]
  %v2529 = vld [vmem:[%s2516 + $0x30] sm:$0xf]
  %v2530 = vld [vmem:[%s2516 + $0x34] sm:$0xf]
  %v2531 = vld [vmem:[%s2516 + $0x38] sm:$0xf]
  %v2532 = vld [vmem:[%s2516 + $0x3c] sm:$0xf]
  %v2533 = vld [vmem:[%s2516 + $0x40] sm:$0xf]
  %v2534 = vld [vmem:[%s2516 + $0x44] sm:$0xf]
  %v2535 = vld [vmem:[%s2516 + $0x48] sm:$0xf]
  %v2536 = vld [vmem:[%s2516 + $0x4c] sm:$0xf]
  %v2537 = vld [vmem:[%s2516 + $0x50] sm:$0xf]
  %v2538 = vld [vmem:[%s2516 + $0x54] sm:$0xf]
  %v2539 = vld [vmem:[%s2516 + $0x58] sm:$0xf]
  %v2540 = vld [vmem:[%s2516 + $0x5c] sm:$0xf]
  %v2541 = vld [vmem:[%s2516 + $0x60] sm:$0xf]
  %v2542 = vld [vmem:[%s2516 + $0x64] sm:$0xf]
  %v2543 = vld [vmem:[%s2516 + $0x68] sm:$0xf]
  %v2544 = vld [vmem:[%s2516 + $0x6c] sm:$0xf]
  %v2545 = vld [vmem:[%s2516 + $0x70] sm:$0xf]
  %v2546 = vld [vmem:[%s2516 + $0x74] sm:$0xf]
  %v2547 = vld [vmem:[%s2516 + $0x78] sm:$0xf]
  %v2548 = vld [vmem:[%s2516 + $0x7c] sm:$0xf]
  %v2551 = vunpack.c.l.b16 %v2514
  %v2552 = vunpack.c.h.b16 %v2514
  %v2553 = vunpack.c.l.b16 %v2515
  %v2554 = vunpack.c.h.b16 %v2515
  %v2555 = vpack.c.b16 %v2553, %v2551
  %v2556 = vpack.c.b16 %v2554, %v2552
  %v2591 = vunpack.c.l.b16 %v2517
  %v2592 = vunpack.c.l.b16 %v2518
  %v2593 = vunpack.c.l.b16 %v2519
  %v2594 = vunpack.c.l.b16 %v2520
  %v2595 = vunpack.c.l.b16 %v2521
  %v2596 = vunpack.c.l.b16 %v2522
  %v2597 = vunpack.c.l.b16 %v2523
  %v2598 = vunpack.c.l.b16 %v2524
  %v2599 = vunpack.c.l.b16 %v2525
  %v2600 = vunpack.c.l.b16 %v2526
  %v2601 = vunpack.c.l.b16 %v2527
  %v2602 = vunpack.c.l.b16 %v2528
  %v2603 = vunpack.c.l.b16 %v2529
  %v2604 = vunpack.c.l.b16 %v2530
  %v2605 = vunpack.c.l.b16 %v2531
  %v2606 = vunpack.c.l.b16 %v2532
  %v2607 = vunpack.c.l.b16 %v2533
  %v2608 = vunpack.c.l.b16 %v2534
  %v2609 = vunpack.c.l.b16 %v2535
  %v2610 = vunpack.c.l.b16 %v2536
  %v2611 = vunpack.c.l.b16 %v2537
  %v2612 = vunpack.c.l.b16 %v2538
  %v2613 = vunpack.c.l.b16 %v2539
  %v2614 = vunpack.c.l.b16 %v2540
  %v2615 = vunpack.c.l.b16 %v2541
  %v2616 = vunpack.c.l.b16 %v2542
  %v2617 = vunpack.c.l.b16 %v2543
  %v2618 = vunpack.c.l.b16 %v2544
  %v2619 = vunpack.c.l.b16 %v2545
  %v2620 = vunpack.c.l.b16 %v2546
  %v2621 = vunpack.c.l.b16 %v2547
  %v2622 = vunpack.c.l.b16 %v2548
  %v2623 = vpack.c.b16 %v2592, %v2591
  %v2624 = vpack.c.b16 %v2594, %v2593
  %v2625 = vpack.c.b16 %v2596, %v2595
  %v2626 = vpack.c.b16 %v2598, %v2597
  %v2627 = vpack.c.b16 %v2600, %v2599
  %v2628 = vpack.c.b16 %v2602, %v2601
  %v2629 = vpack.c.b16 %v2604, %v2603
  %v2630 = vpack.c.b16 %v2606, %v2605
  %v2631 = vpack.c.b16 %v2608, %v2607
  %v2632 = vpack.c.b16 %v2610, %v2609
  %v2633 = vpack.c.b16 %v2612, %v2611
  %v2634 = vpack.c.b16 %v2614, %v2613
  %v2635 = vpack.c.b16 %v2616, %v2615
  %v2636 = vpack.c.b16 %v2618, %v2617
  %v2637 = vpack.c.b16 %v2620, %v2619
  %v2638 = vpack.c.b16 %v2622, %v2621
  %2655 = vmatpush.bf16.msra.mxu0 %v2630
  %2656 = vmatpush.bf16.msra.mxu0 %v2629
  %2657 = vmatpush.bf16.msra.mxu0 %v2628
  %2658 = vmatpush.bf16.msra.mxu0 %v2627
  %2659 = vmatpush.bf16.msra.mxu0 %v2626
  %2660 = vmatpush.bf16.msra.mxu0 %v2625
  %2661 = vmatpush.bf16.msra.mxu0 %v2624
  %2662 = vmatpush.bf16.msra.mxu0 %v2623
  %2663 = vmatmul.bf16.gmra.mxu0 %v2555
  %v2664 = vpop.f32.mrf.mxu0
  %v2665 = vadd.f32 0.0, %v2664
  %v2666 = vpop.f32.mrf.mxu0
  %v2667 = vadd.f32 0.0, %v2666
  %2668 = vdwg.mxu0
  %2669 = vmatpush.bf16.msra.mxu0 %v2638
  %2670 = vmatpush.bf16.msra.mxu0 %v2637
  %2671 = vmatpush.bf16.msra.mxu0 %v2636
  %2672 = vmatpush.bf16.msra.mxu0 %v2635
  %2673 = vmatpush.bf16.msra.mxu0 %v2634
  %2674 = vmatpush.bf16.msra.mxu0 %v2633
  %2675 = vmatpush.bf16.msra.mxu0 %v2632
  %2676 = vmatpush.bf16.msra.mxu0 %v2631
  %2677 = vmatmul.bf16.gmra.mxu0 %v2556
  %v2678 = vpop.f32.mrf.mxu0
  %v2679 = vadd.f32 %v2665, %v2678
  %v2680 = vpop.f32.mrf.mxu0
  %v2681 = vadd.f32 %v2667, %v2680
  %2682 = vdwg.mxu0
  %v2683 = vadd.f32 %v2510, %v2679
  %v2684 = vadd.f32 %v2512, %v2681
  %v2685 = vld [vmem:[#allocation3 + $0x30] sm:$0xff]
  %v2686 = vld [vmem:[#allocation3 + $0x38] sm:$0xff]
  %s2687 = scalar_lea.vmem %s5, 384
  %v2688 = vld [vmem:[%s2687] sm:$0xf]
  %v2689 = vld [vmem:[%s2687 + $0x4] sm:$0xf]
  %v2690 = vld [vmem:[%s2687 + $0x8] sm:$0xf]
  %v2691 = vld [vmem:[%s2687 + $0xc] sm:$0xf]
  %v2692 = vld [vmem:[%s2687 + $0x10] sm:$0xf]
  %v2693 = vld [vmem:[%s2687 + $0x14] sm:$0xf]
  %v2694 = vld [vmem:[%s2687 + $0x18] sm:$0xf]
  %v2695 = vld [vmem:[%s2687 + $0x1c] sm:$0xf]
  %v2696 = vld [vmem:[%s2687 + $0x20] sm:$0xf]
  %v2697 = vld [vmem:[%s2687 + $0x24] sm:$0xf]
  %v2698 = vld [vmem:[%s2687 + $0x28] sm:$0xf]
  %v2699 = vld [vmem:[%s2687 + $0x2c] sm:$0xf]
  %v2700 = vld [vmem:[%s2687 + $0x30] sm:$0xf]
  %v2701 = vld [vmem:[%s2687 + $0x34] sm:$0xf]
  %v2702 = vld [vmem:[%s2687 + $0x38] sm:$0xf]
  %v2703 = vld [vmem:[%s2687 + $0x3c] sm:$0xf]
  %v2704 = vld [vmem:[%s2687 + $0x40] sm:$0xf]
  %v2705 = vld [vmem:[%s2687 + $0x44] sm:$0xf]
  %v2706 = vld [vmem:[%s2687 + $0x48] sm:$0xf]
  %v2707 = vld [vmem:[%s2687 + $0x4c] sm:$0xf]
  %v2708 = vld [vmem:[%s2687 + $0x50] sm:$0xf]
  %v2709 = vld [vmem:[%s2687 + $0x54] sm:$0xf]
  %v2710 = vld [vmem:[%s2687 + $0x58] sm:$0xf]
  %v2711 = vld [vmem:[%s2687 + $0x5c] sm:$0xf]
  %v2712 = vld [vmem:[%s2687 + $0x60] sm:$0xf]
  %v2713 = vld [vmem:[%s2687 + $0x64] sm:$0xf]
  %v2714 = vld [vmem:[%s2687 + $0x68] sm:$0xf]
  %v2715 = vld [vmem:[%s2687 + $0x6c] sm:$0xf]
  %v2716 = vld [vmem:[%s2687 + $0x70] sm:$0xf]
  %v2717 = vld [vmem:[%s2687 + $0x74] sm:$0xf]
  %v2718 = vld [vmem:[%s2687 + $0x78] sm:$0xf]
  %v2719 = vld [vmem:[%s2687 + $0x7c] sm:$0xf]
  %v2722 = vunpack.c.l.b16 %v2685
  %v2723 = vunpack.c.h.b16 %v2685
  %v2724 = vunpack.c.l.b16 %v2686
  %v2725 = vunpack.c.h.b16 %v2686
  %v2726 = vpack.c.b16 %v2724, %v2722
  %v2727 = vpack.c.b16 %v2725, %v2723
  %v2762 = vunpack.c.l.b16 %v2688
  %v2763 = vunpack.c.l.b16 %v2689
  %v2764 = vunpack.c.l.b16 %v2690
  %v2765 = vunpack.c.l.b16 %v2691
  %v2766 = vunpack.c.l.b16 %v2692
  %v2767 = vunpack.c.l.b16 %v2693
  %v2768 = vunpack.c.l.b16 %v2694
  %v2769 = vunpack.c.l.b16 %v2695
  %v2770 = vunpack.c.l.b16 %v2696
  %v2771 = vunpack.c.l.b16 %v2697
  %v2772 = vunpack.c.l.b16 %v2698
  %v2773 = vunpack.c.l.b16 %v2699
  %v2774 = vunpack.c.l.b16 %v2700
  %v2775 = vunpack.c.l.b16 %v2701
  %v2776 = vunpack.c.l.b16 %v2702
  %v2777 = vunpack.c.l.b16 %v2703
  %v2778 = vunpack.c.l.b16 %v2704
  %v2779 = vunpack.c.l.b16 %v2705
  %v2780 = vunpack.c.l.b16 %v2706
  %v2781 = vunpack.c.l.b16 %v2707
  %v2782 = vunpack.c.l.b16 %v2708
  %v2783 = vunpack.c.l.b16 %v2709
  %v2784 = vunpack.c.l.b16 %v2710
  %v2785 = vunpack.c.l.b16 %v2711
  %v2786 = vunpack.c.l.b16 %v2712
  %v2787 = vunpack.c.l.b16 %v2713
  %v2788 = vunpack.c.l.b16 %v2714
  %v2789 = vunpack.c.l.b16 %v2715
  %v2790 = vunpack.c.l.b16 %v2716
  %v2791 = vunpack.c.l.b16 %v2717
  %v2792 = vunpack.c.l.b16 %v2718
  %v2793 = vunpack.c.l.b16 %v2719
  %v2794 = vpack.c.b16 %v2763, %v2762
  %v2795 = vpack.c.b16 %v2765, %v2764
  %v2796 = vpack.c.b16 %v2767, %v2766
  %v2797 = vpack.c.b16 %v2769, %v2768
  %v2798 = vpack.c.b16 %v2771, %v2770
  %v2799 = vpack.c.b16 %v2773, %v2772
  %v2800 = vpack.c.b16 %v2775, %v2774
  %v2801 = vpack.c.b16 %v2777, %v2776
  %v2802 = vpack.c.b16 %v2779, %v2778
  %v2803 = vpack.c.b16 %v2781, %v2780
  %v2804 = vpack.c.b16 %v2783, %v2782
  %v2805 = vpack.c.b16 %v2785, %v2784
  %v2806 = vpack.c.b16 %v2787, %v2786
  %v2807 = vpack.c.b16 %v2789, %v2788
  %v2808 = vpack.c.b16 %v2791, %v2790
  %v2809 = vpack.c.b16 %v2793, %v2792
  %2826 = vmatpush.bf16.msra.mxu0 %v2801
  %2827 = vmatpush.bf16.msra.mxu0 %v2800
  %2828 = vmatpush.bf16.msra.mxu0 %v2799
  %2829 = vmatpush.bf16.msra.mxu0 %v2798
  %2830 = vmatpush.bf16.msra.mxu0 %v2797
  %2831 = vmatpush.bf16.msra.mxu0 %v2796
  %2832 = vmatpush.bf16.msra.mxu0 %v2795
  %2833 = vmatpush.bf16.msra.mxu0 %v2794
  %2834 = vmatmul.bf16.gmra.mxu0 %v2726
  %v2835 = vpop.f32.mrf.mxu0
  %v2836 = vadd.f32 0.0, %v2835
  %v2837 = vpop.f32.mrf.mxu0
  %v2838 = vadd.f32 0.0, %v2837
  %2839 = vdwg.mxu0
  %2840 = vmatpush.bf16.msra.mxu0 %v2809
  %2841 = vmatpush.bf16.msra.mxu0 %v2808
  %2842 = vmatpush.bf16.msra.mxu0 %v2807
  %2843 = vmatpush.bf16.msra.mxu0 %v2806
  %2844 = vmatpush.bf16.msra.mxu0 %v2805
  %2845 = vmatpush.bf16.msra.mxu0 %v2804
  %2846 = vmatpush.bf16.msra.mxu0 %v2803
  %2847 = vmatpush.bf16.msra.mxu0 %v2802
  %2848 = vmatmul.bf16.gmra.mxu0 %v2727
  %v2849 = vpop.f32.mrf.mxu0
  %v2850 = vadd.f32 %v2836, %v2849
  %v2851 = vpop.f32.mrf.mxu0
  %v2852 = vadd.f32 %v2838, %v2851
  %2853 = vdwg.mxu0
  %v2854 = vadd.f32 %v2683, %v2850
  %v2855 = vadd.f32 %v2684, %v2852
  %v2856 = vld [vmem:[%s6] sm:$0x1]
  %v2858 = vperm.slane %v2856, 0
  %v2860 = vadd.f32 %v2854, %v2858
  %v2861 = vadd.f32 %v2855, %v2858
  %v2862 = vmax.f32 %v2860, 0.0
  %v2863 = vmax.f32 %v2861, 0.0
  %v2864 = vsub.f32 %v2862, %v2863
  %v2865 = vld [vmem:[%s7] sm:$0x1]
  %v2867 = vperm.slane %v2865, 0
  %v2869 = vmul.f32 %v2864, %v2867
  %2870 = vadd.xlane.f32.xlu0 %v2869
  %v2871 = vpop.xlane.xlu0 %2870
  %v2872 = vand.u32 2147483647, %v2871
  %v2873 = vxor.u32 %v2872, 2147483648
  %v2874 = vmul.f32 %v2873, 1.442695
  %v2875 = vpow.pop %v2874
  %v2876 = vadd.f32 %v2875, 1.0
  %v2877 = vrcp.pop %v2876
  %v2878 = vmul.f32 %v2876, %v2877
  %v2879 = vsub.f32 1.0, %v2878
  %v2880 = vmul.f32 %v2877, %v2879
  %v2881 = vadd.f32 %v2877, %v2880
  %vm2882 = vweird.f32 %v2876
  %vm2883 = vweird.f32 %v2877
  %vm2884 = vmor %vm2882, %vm2883
  %v2885 = vsel %vm2884, %v2877, %v2881
  %v2886 = vand.u32 2147483647, %v2876
  %vm2887 = vcmp.eq.f32.partialorder %v2886, 8.507059e+37
  %v2888 = vand.u32 %v2876, 2147483648
  %v2889 = vor.u32 1.1754944e-38, %v2888
  %v2890 = vsel %vm2887, %v2889, %v2885
  %v2891 = vmul.f32 1.0, %v2890
  %vm2892 = vcmask 7168
  %2893 = vst.msk [vmem:[%s8] sm:$0xff] %vm2892, %v2891
  // Predicated region
  $region34: #{siamese_forward.1} parent=0 // pred_check
    _
  $region35: #{siamese_forward.1} parent=0 // pred_check_branch
    %2895 = sbr.rel (0) target = $region37
  $region36: #{siamese_forward.1} parent=0 // pred_region
    _
  $region37: #{siamese_forward.1} parent=0 // pred_fallthru
    _
  // Predicated region
  $region38: #{siamese_forward.1} parent=0 // pred_check
    _
  $region39: #{siamese_forward.1} parent=0 // pred_check_branch
    %2897 = sbr.rel (0) target = $region41
  $region40: #{siamese_forward.1} parent=0 // pred_region
    _
  $region41: #{siamese_forward.1} parent=0 // pred_fallthru
    _

</llo_original>
